<compile_context>
chip_gen: v6e
topology: v6e:2x2x1
jax: 0.10.0
libtpu: 0.0.40
codegen_flags: <defaults>
</compile_context>

<pallas_src>
from functools import partial

import jax
import jax.numpy as jnp
import numpy as np
from jax import lax
from jax.experimental import pallas as pl
from jax.experimental.pallas import tpu as pltpu


def _round_up(x, m):
    return ((x + m - 1) // m) * m


def _pad_gate_cols(w, H, Hp):
    """(R, 4H) -> (R, 4Hp): gate k (PyTorch order i,f,g,o) occupies columns
    [k*Hp, k*Hp+H); all other columns are zero (gate blocks 128-lane aligned)."""
    if Hp == H:
        return w
    parts = [jnp.pad(w[:, k * H:(k + 1) * H], ((0, 0), (0, Hp - H)))
             for k in range(4)]
    return jnp.concatenate(parts, axis=1)


def _pick_time_chunk(S, Bt, E, Hp, x_itemsize, xg_itemsize,
                     max_unroll=16, chunk_budget_bytes=4 << 20):
    """Largest time chunk whose x (double-buffered) + xg footprint stays within
    a modest VMEM budget, capped so the unrolled in-kernel loop stays short."""
    per_step = Bt * (4 * Hp * xg_itemsize + 2 * E * x_itemsize)
    return int(max(1, min(S, max_unroll, chunk_budget_bytes // per_step)))


def _vmem_limit_bytes(E, Hp, Op, Bt, Ts, w_item, xg_item):
    weights = (E * 4 * Hp + Hp * 4 * Hp + Hp * Op) * w_item + (4 * Hp + Op) * 4
    x_bufs = 2 * Ts * Bt * E * w_item            # double-buffered input chunk
    xg = Ts * Bt * 4 * Hp * xg_item              # scratch
    state = 3 * Bt * Hp * 4                      # h / c / acc (f32)
    outs = 2 * Bt * (Op + Hp) * 4                # outputs (double-buffered)
    need = weights + x_bufs + xg + state + outs
    return int(min(max(2 * need + (2 << 20), 8 << 20), 64 << 20))


def _lstm_chunk_kernel(x_ref, wih_ref, whh_ref, b_ref, wfc_ref, bfc_ref,
                       logits_ref, sent_ref,
                       xg_ref, h_ref, c_ref, acc_ref,
                       *, seq_len, ts, bt, hp, mm_dtype):
    """Grid = (batch tiles [parallel], time chunks [arbitrary]).

    x_ref   : (Ts*Bt, E)     embedded chunk, rows [t*Bt + b] (matmul dtype)
    wih_ref : (E, 4*Hp)      input->gates weight, gate blocks 128-lane aligned
    whh_ref : (Hp, 4*Hp)     hidden->gates weight (padded rows/cols zero)
    b_ref   : (1, 4*Hp)      f32 combined bias (b_ih + b_hh), padded lanes zero
    wfc_ref : (Hp, Op)       fc weight (padded)
    bfc_ref : (1, Op)        f32 fc bias (padded)
    logits_ref : (Bt, Op)    output (written at last time chunk)
    sent_ref   : (Bt, Hp)    output, mean-pooled hidden (last time chunk)
    xg_ref  : (Ts*Bt, 4*Hp)  scratch: chunk input projections
    h/c/acc : (Bt, Hp) f32   carried LSTM state / mean accumulator
    """
    ti = pl.program_id(1)

    @pl.when(ti == 0)
    def _():
        h_ref[...] = jnp.zeros_like(h_ref)
        c_ref[...] = jnp.zeros_like(c_ref)
        acc_ref[...] = jnp.zeros_like(acc_ref)

    # Chunk input projection x @ W_ih + b, hoisted off the serial recurrence
    # chain and parked in VMEM scratch (not vregs). Issued in a few row-block
    # pieces: only the first piece gates the first recurrence step, so later
    # (MXU-efficient) pieces can overlap the early latency-bound recurrence.
    piece = max(1, ts // 4)
    for p0 in range(0, ts, piece):
        p1 = min(ts, p0 + piece)
        xp = (jnp.dot(x_ref[p0 * bt:p1 * bt, :], wih_ref[...],
                      preferred_element_type=jnp.float32) + b_ref[...])
        xg_ref[p0 * bt:p1 * bt, :] = xp.astype(xg_ref.dtype)

    h = h_ref[...]
    c = c_ref[...]
    acc = acc_ref[...]

    # Serial recurrence over this chunk (Ts <= 16, unrolled; the time-chunk
    # grid bounds the unroll / vreg live ranges). Gate slices are 128-lane
    # aligned full-vreg slices (no XLU shuffles).
    for t in range(ts):
        # Arithmetic mask for time-padding steps (S_pad > S in the last chunk).
        m = (ti * ts + t < seq_len).astype(jnp.float32)
        gates = (xg_ref[t * bt:(t + 1) * bt, :].astype(jnp.float32)
                 + jnp.dot(h.astype(mm_dtype), whh_ref[...],
                           preferred_element_type=jnp.float32))
        # PyTorch LSTM gate order: i, f, g, o — each in its own 128-lane block.
        i_g = jax.nn.sigmoid(gates[:, 0 * hp:1 * hp])
        f_g = jax.nn.sigmoid(gates[:, 1 * hp:2 * hp])
        g_g = jnp.tanh(gates[:, 2 * hp:3 * hp])
        o_g = jax.nn.sigmoid(gates[:, 3 * hp:4 * hp])
        c_n = f_g * c + i_g * g_g
        h_n = o_g * jnp.tanh(c_n)
        c = c + m * (c_n - c)
        h = h + m * (h_n - h)
        acc = acc + m * h_n

    h_ref[...] = h
    c_ref[...] = c
    acc_ref[...] = acc

    # Finalize: mean over the full (unpadded) sequence length + fused FC,
    # matching the torch module (divides by S including its padding tokens).
    @pl.when(ti == pl.num_programs(1) - 1)
    def _():
        sent = acc * (1.0 / seq_len)
        sent_ref[...] = sent.astype(sent_ref.dtype)
        logits = (jnp.dot(sent.astype(mm_dtype), wfc_ref[...],
                          preferred_element_type=jnp.float32) + bfc_ref[...])
        logits_ref[...] = logits.astype(logits_ref.dtype)


def rnn_forward_pallas(text, params, *, matmul_dtype=jnp.bfloat16,
                       time_chunk=None, batch_tile=None):
    """text: (S, B) int32 token ids. Returns (logits, sent_emb, word_emb)."""
    emb_table = params["embedding"]          # (V, E)
    w_ih_T = params["w_ih_T"]                # (E, 4H)
    w_hh_T = params["w_hh_T"]                # (H, 4H)
    b_gates = params["b_gates"]              # (1, 4H)
    w_fc_T = params["w_fc_T"]                # (H, O)
    b_fc = params["b_fc"]                    # (1, O)

    S, B = text.shape
    E = emb_table.shape[1]
    H = w_hh_T.shape[0]
    O = w_fc_T.shape[1]

    Hp = _round_up(H, 128)                   # lane-aligned gate / hidden width
    Op = _round_up(O, 128)                   # lane-dense logits store

    if batch_tile is None:
        batch_tile = min(_round_up(B, 8), 32)
    Bt = _round_up(batch_tile, 8)            # sublane-aligned batch tile
    Bp = _round_up(B, Bt)
    n_bt = Bp // Bt

    mm_dtype = jnp.dtype(matmul_dtype)
    xg_dtype = mm_dtype                      # bf16 xg halves the dominant buffer
    w_item = mm_dtype.itemsize
    xg_item = jnp.dtype(xg_dtype).itemsize

    if time_chunk is None:
        time_chunk = _pick_time_chunk(S, Bt, E, Hp, w_item, xg_item)
    Ts = max(1, min(int(time_chunk), S))
    S_pad = _round_up(S, Ts)
    n_tc = S_pad // Ts

    # Embedding lookup (plain JAX gather). word_emb is a module output, so this
    # HBM materialization is needed regardless.
    # TODO(synk): fuse the gather in-kernel (scalar-prefetch ids + DMA rows).
    x_sbe = emb_table[text]                                         # (S, B, E) f32
    x_pad = jnp.pad(x_sbe, ((0, S_pad - S), (0, Bp - B), (0, 0)))   # (S_pad, Bp, E)
    # Rearrange once in XLA so each grid block is a contiguous (Ts*Bt, E) slab
    # with rows [t*Bt + b] (no in-kernel relayout).
    x_in = (x_pad.reshape(n_tc, Ts, n_bt, Bt, E)
                 .transpose(0, 2, 1, 3, 4)
                 .reshape(n_tc, n_bt, Ts * Bt, E)
                 .astype(mm_dtype))

    # Lane-aligned (gate-padded) parameters; padded positions are zero, which
    # keeps padded hidden lanes exactly zero through the recurrence.
    wih_p = _pad_gate_cols(w_ih_T, H, Hp).astype(mm_dtype)                     # (E, 4Hp)
    whh_p = _pad_gate_cols(jnp.pad(w_hh_T, ((0, Hp - H), (0, 0))),
                           H, Hp).astype(mm_dtype)                             # (Hp, 4Hp)
    b_p = _pad_gate_cols(b_gates, H, Hp).astype(jnp.float32)                   # (1, 4Hp)
    wfc_p = jnp.pad(w_fc_T, ((0, Hp - H), (0, Op - O))).astype(mm_dtype)       # (Hp, Op)
    bfc_p = jnp.pad(b_fc, ((0, 0), (0, Op - O))).astype(jnp.float32)           # (1, Op)

    kernel = partial(_lstm_chunk_kernel, seq_len=S, ts=Ts, bt=Bt, hp=Hp,
                     mm_dtype=mm_dtype)

    grid_spec = pltpu.PrefetchScalarGridSpec(
        num_scalar_prefetch=0,
        grid=(n_bt, n_tc),
        in_specs=[
            pl.BlockSpec((None, None, Ts * Bt, E), lambda bi, ti: (ti, bi, 0, 0)),
            pl.BlockSpec(wih_p.shape, lambda bi, ti: (0, 0)),
            pl.BlockSpec(whh_p.shape, lambda bi, ti: (0, 0)),
            pl.BlockSpec(b_p.shape, lambda bi, ti: (0, 0)),
            pl.BlockSpec(wfc_p.shape, lambda bi, ti: (0, 0)),
            pl.BlockSpec(bfc_p.shape, lambda bi, ti: (0, 0)),
        ],
        out_specs=(
            pl.BlockSpec((Bt, Op), lambda bi, ti: (bi, 0)),
            pl.BlockSpec((Bt, Hp), lambda bi, ti: (bi, 0)),
        ),
        scratch_shapes=[
            pltpu.VMEM((Ts * Bt, 4 * Hp), xg_dtype),   # chunk input projections
            pltpu.VMEM((Bt, Hp), jnp.float32),         # h  (carried)
            pltpu.VMEM((Bt, Hp), jnp.float32),         # c  (carried)
            pltpu.VMEM((Bt, Hp), jnp.float32),         # acc (carried mean sum)
        ],
    )

    logits_p, sent_p = pl.pallas_call(
        kernel,
        grid_spec=grid_spec,
        out_shape=(jax.ShapeDtypeStruct((Bp, Op), jnp.float32),
                   jax.ShapeDtypeStruct((Bp, Hp), jnp.float32)),
        compiler_params=pltpu.CompilerParams(
            dimension_semantics=("parallel", "arbitrary"),
            vmem_limit_bytes=_vmem_limit_bytes(E, Hp, Op, Bt, Ts, w_item, xg_item),
        ),
    )(x_in, wih_p, whh_p, b_p, wfc_p, bfc_p)

    logits = logits_p[:B, :O]       # padded batch rows / lanes sliced off
    sent_emb = sent_p[:B, :H]
    # word_emb in batch-first layout, matching torch's permute(1,0,2)
    word_emb = jnp.transpose(x_sbe, (1, 0, 2))   # (B, S, E)
    return logits, sent_emb, word_emb


def rnn_forward_ref(text, params):
    """Pure-JAX f32 reference (lax.scan LSTM) for correctness checking."""
    emb_table = params["embedding"]
    w_ih_T, w_hh_T = params["w_ih_T"], params["w_hh_T"]
    b_gates = params["b_gates"]
    w_fc_T, b_fc = params["w_fc_T"], params["b_fc"]

    H = w_hh_T.shape[0]
    x_sbe = emb_table[text]                  # (S, B, E)
    B = text.shape[1]

    def step(carry, x_t):
        h, c = carry
        gates = x_t @ w_ih_T + h @ w_hh_T + b_gates
        i = jax.nn.sigmoid(gates[:, 0:H])
        f = jax.nn.sigmoid(gates[:, H:2 * H])
        g = jnp.tanh(gates[:, 2 * H:3 * H])
        o = jax.nn.sigmoid(gates[:, 3 * H:4 * H])
        c = f * c + i * g
        h = o * jnp.tanh(c)
        return (h, c), h

    h0 = jnp.zeros((B, H), jnp.float32)
    c0 = jnp.zeros((B, H), jnp.float32)
    (_, _), hs = lax.scan(step, (h0, c0), x_sbe)   # (S, B, H)
    sent_emb = hs.mean(axis=0)
    logits = sent_emb @ w_fc_T + b_fc
    word_emb = jnp.transpose(x_sbe, (1, 0, 2))
    return logits, sent_emb, word_emb


def make_params(key, vocab_size, embedding_dim, hidden_dim, output_dim, pad_idx):
    ks = jax.random.split(key, 8)
    H = hidden_dim
    scale = 1.0 / np.sqrt(H)
    emb = jax.random.normal(ks[0], (vocab_size, embedding_dim), jnp.float32) * 0.1
    emb = emb.at[pad_idx].set(0.0)  # padding_idx row is zero, as in nn.Embedding
    w_ih = jax.random.uniform(ks[1], (4 * H, embedding_dim), jnp.float32, -scale, scale)
    w_hh = jax.random.uniform(ks[2], (4 * H, H), jnp.float32, -scale, scale)
    b_ih = jax.random.uniform(ks[3], (4 * H,), jnp.float32, -scale, scale)
    b_hh = jax.random.uniform(ks[4], (4 * H,), jnp.float32, -scale, scale)
    w_fc = jax.random.uniform(ks[5], (output_dim, H), jnp.float32, -scale, scale)
    b_fc = jax.random.uniform(ks[6], (output_dim,), jnp.float32, -scale, scale)
    return {
        "embedding": emb,
        "w_ih_T": jnp.transpose(w_ih),                       # (E, 4H)
        "w_hh_T": jnp.transpose(w_hh),                       # (H, 4H)
        "b_gates": (b_ih + b_hh).reshape(1, 4 * H),          # (1, 4H)
        "w_fc_T": jnp.transpose(w_fc),                       # (H, O)
        "b_fc": b_fc.reshape(1, output_dim),                 # (1, O)
    }


if __name__ == "__main__":
    VOCAB, EMB, HID, OUT = 50, 32, 32, 4
    PAD_IDX = 0
    key = jax.random.PRNGKey(0)
    k_text, k_params, k_text2 = jax.random.split(key, 3)
    params = make_params(k_params, VOCAB, EMB, HID, OUT, PAD_IDX)

    # Config 1: the module's toy shapes; text is (sent_len=8, batch=2) token ids.
    text = jax.random.randint(k_text, (8, 2), 1, VOCAB, dtype=jnp.int32)
    ref = rnn_forward_ref(text, params)

    # (a) Tight structural check: f32 matmuls, forced multi-chunk time grid so
    #     the carried-state (h/c/acc across chunks) path is exercised.
    out_f32 = rnn_forward_pallas(text, params, matmul_dtype=jnp.float32, time_chunk=4)
    jax.block_until_ready(out_f32)
    for got, want in zip(out_f32, ref):
        np.testing.assert_allclose(np.asarray(got), np.asarray(want),
                                   rtol=1e-5, atol=1e-5)

    # (b) Default performance path: bf16 matmul operands + bf16 xg scratch
    #     (f32 gate math / state) — loose tolerance for bf16 rounding.
    out_bf16 = rnn_forward_pallas(text, params)
    jax.block_until_ready(out_bf16)
    np.testing.assert_allclose(np.asarray(out_bf16[0]), np.asarray(ref[0]),
                               rtol=2e-2, atol=2e-2)
    np.testing.assert_allclose(np.asarray(out_bf16[1]), np.asarray(ref[1]),
                               rtol=2e-2, atol=2e-2)
    np.testing.assert_allclose(np.asarray(out_bf16[2]), np.asarray(ref[2]),
                               rtol=1e-6, atol=1e-6)

    # Config 2: ragged time (S=10 not divisible by Ts=4 -> masked tail chunk)
    # and two batch tiles (B=12, Bt=8 -> padded second tile).
    text2 = jax.random.randint(k_text2, (10, 12), 1, VOCAB, dtype=jnp.int32)
    ref2 = rnn_forward_ref(text2, params)
    out2 = rnn_forward_pallas(text2, params, matmul_dtype=jnp.float32,
                              time_chunk=4, batch_tile=8)
    jax.block_until_ready(out2)
    for got, want in zip(out2, ref2):
        np.testing.assert_allclose(np.asarray(got), np.asarray(want),
                                   rtol=1e-5, atol=1e-5)

    print("KERNEL_OK")
</pallas_src>

<mosaic_0001>
module attributes {stable_mosaic.version = 11 : i64} {
  func.func @_lstm_chunk_kernel(%arg0: i32, %arg1: i32, %arg2: memref<1x1x32x32xf32, #tpu.memory_space<vmem>>, %arg3: memref<32x512xf32, #tpu.memory_space<vmem>>, %arg4: memref<128x512xf32, #tpu.memory_space<vmem>>, %arg5: memref<1x512xf32, #tpu.memory_space<vmem>>, %arg6: memref<128x128xf32, #tpu.memory_space<vmem>>, %arg7: memref<1x128xf32, #tpu.memory_space<vmem>>, %arg8: memref<8x128xf32, #tpu.memory_space<vmem>>, %arg9: memref<8x128xf32, #tpu.memory_space<vmem>>, %arg10: memref<32x512xf32, #tpu.memory_space<vmem>>, %arg11: memref<8x128xf32, #tpu.memory_space<vmem>>, %arg12: memref<8x128xf32, #tpu.memory_space<vmem>>, %arg13: memref<8x128xf32, #tpu.memory_space<vmem>>) attributes {dimension_semantics = [#tpu.dimension_semantics<parallel>, #tpu.dimension_semantics<arbitrary>], iteration_bounds = array<i64: 1, 2>, scalar_prefetch = 0 : i64, scratch_operands = 4 : i64, tpu.core_type = #tpu.core_type<tc>, window_params = [{transform_indices = @transform_0, window_bounds = array<i64: 1, 1, 32, 32>}, {pipeline_mode = #tpu.pipeline_mode<synchronous>, transform_indices = @transform_1, window_bounds = array<i64: 32, 512>}, {pipeline_mode = #tpu.pipeline_mode<synchronous>, transform_indices = @transform_2, window_bounds = array<i64: 128, 512>}, {pipeline_mode = #tpu.pipeline_mode<synchronous>, transform_indices = @transform_3, window_bounds = array<i64: 1, 512>}, {pipeline_mode = #tpu.pipeline_mode<synchronous>, transform_indices = @transform_4, window_bounds = array<i64: 128, 128>}, {pipeline_mode = #tpu.pipeline_mode<synchronous>, transform_indices = @transform_5, window_bounds = array<i64: 1, 128>}, {transform_indices = @transform_6, window_bounds = array<i64: 8, 128>}, {transform_indices = @transform_7, window_bounds = array<i64: 8, 128>}]} {
    %c0_i32 = arith.constant 0 : i32
    %0 = arith.cmpi eq, %arg1, %c0_i32 : i32
    %1 = arith.extui %0 : i1 to i32
    %c0_i32_0 = arith.constant 0 : i32
    %2 = arith.cmpi ne, %1, %c0_i32_0 : i32
    scf.if %2 {
      %cst_93 = arith.constant 0.000000e+00 : f32
      %224 = vector.broadcast %cst_93 : f32 to vector<8x128xf32>
      %c0_94 = arith.constant 0 : index
      %c0_95 = arith.constant 0 : index
      %225 = vector.load %arg11[%c0_94, %c0_95] : memref<8x128xf32, #tpu.memory_space<vmem>>, vector<8x128xf32>
      tpu.vector_store %arg11[%c0_94, %c0_95], %224 {strides = array<i32>} : memref<8x128xf32, #tpu.memory_space<vmem>>, vector<8x128xf32>,
      %cst_96 = arith.constant 0.000000e+00 : f32
      %226 = vector.broadcast %cst_96 : f32 to vector<8x128xf32>
      %c0_97 = arith.constant 0 : index
      %c0_98 = arith.constant 0 : index
      %227 = vector.load %arg12[%c0_97, %c0_98] : memref<8x128xf32, #tpu.memory_space<vmem>>, vector<8x128xf32>
      tpu.vector_store %arg12[%c0_97, %c0_98], %226 {strides = array<i32>} : memref<8x128xf32, #tpu.memory_space<vmem>>, vector<8x128xf32>,
      %cst_99 = arith.constant 0.000000e+00 : f32
      %228 = vector.broadcast %cst_99 : f32 to vector<8x128xf32>
      %c0_100 = arith.constant 0 : index
      %c0_101 = arith.constant 0 : index
      %229 = vector.load %arg13[%c0_100, %c0_101] : memref<8x128xf32, #tpu.memory_space<vmem>>, vector<8x128xf32>
      tpu.vector_store %arg13[%c0_100, %c0_101], %228 {strides = array<i32>} : memref<8x128xf32, #tpu.memory_space<vmem>>, vector<8x128xf32>,
    } else {
    }
    %c0 = arith.constant 0 : index
    %c0_1 = arith.constant 0 : index
    %c0_2 = arith.constant 0 : index
    %c0_3 = arith.constant 0 : index
    %3 = vector.load %arg2[%c0, %c0_1, %c0_2, %c0_3] : memref<1x1x32x32xf32, #tpu.memory_space<vmem>>, vector<1x1x8x32xf32>
    %4 = vector.shape_cast %3 : vector<1x1x8x32xf32> to vector<8x32xf32>
    %c0_4 = arith.constant 0 : index
    %c0_5 = arith.constant 0 : index
    %5 = vector.load %arg3[%c0_4, %c0_5] : memref<32x512xf32, #tpu.memory_space<vmem>>, vector<32x512xf32>
    %cst = arith.constant dense<0.000000e+00> : vector<8x512xf32>
    %6 = tpu.matmul %4, %5, %cst {dimension_numbers = #tpu.dot_dimension_numbers<[1], [0], [0], [1], [0, 0, 1, 1], [], []>} : vector<8x32xf32>, vector<32x512xf32>, vector<8x512xf32> -> vector<8x512xf32>
    %c0_6 = arith.constant 0 : index
    %c0_7 = arith.constant 0 : index
    %7 = vector.load %arg5[%c0_6, %c0_7] : memref<1x512xf32, #tpu.memory_space<vmem>>, vector<1x512xf32>
    %8 = vector.broadcast %7 : vector<1x512xf32> to vector<8x512xf32>
    %9 = arith.addf %6, %8 : vector<8x512xf32>
    %c0_8 = arith.constant 0 : index
    %c0_9 = arith.constant 0 : index
    %10 = vector.load %arg10[%c0_8, %c0_9] : memref<32x512xf32, #tpu.memory_space<vmem>>, vector<8x512xf32>
    tpu.vector_store %arg10[%c0_8, %c0_9], %9 {strides = array<i32>} : memref<32x512xf32, #tpu.memory_space<vmem>>, vector<8x512xf32>,
    %c0_10 = arith.constant 0 : index
    %c0_11 = arith.constant 0 : index
    %c8 = arith.constant 8 : index
    %c0_12 = arith.constant 0 : index
    %11 = vector.load %arg2[%c0_10, %c0_11, %c8, %c0_12] : memref<1x1x32x32xf32, #tpu.memory_space<vmem>>, vector<1x1x8x32xf32>
    %12 = vector.shape_cast %11 : vector<1x1x8x32xf32> to vector<8x32xf32>
    %c0_13 = arith.constant 0 : index
    %c0_14 = arith.constant 0 : index
    %13 = vector.load %arg3[%c0_13, %c0_14] : memref<32x512xf32, #tpu.memory_space<vmem>>, vector<32x512xf32>
    %cst_15 = arith.constant dense<0.000000e+00> : vector<8x512xf32>
    %14 = tpu.matmul %12, %13, %cst_15 {dimension_numbers = #tpu.dot_dimension_numbers<[1], [0], [0], [1], [0, 0, 1, 1], [], []>} : vector<8x32xf32>, vector<32x512xf32>, vector<8x512xf32> -> vector<8x512xf32>
    %c0_16 = arith.constant 0 : index
    %c0_17 = arith.constant 0 : index
    %15 = vector.load %arg5[%c0_16, %c0_17] : memref<1x512xf32, #tpu.memory_space<vmem>>, vector<1x512xf32>
    %16 = vector.broadcast %15 : vector<1x512xf32> to vector<8x512xf32>
    %17 = arith.addf %14, %16 : vector<8x512xf32>
    %c8_18 = arith.constant 8 : index
    %c0_19 = arith.constant 0 : index
    %18 = vector.load %arg10[%c8_18, %c0_19] : memref<32x512xf32, #tpu.memory_space<vmem>>, vector<8x512xf32>
    tpu.vector_store %arg10[%c8_18, %c0_19], %17 {strides = array<i32>} : memref<32x512xf32, #tpu.memory_space<vmem>>, vector<8x512xf32>,
    %c0_20 = arith.constant 0 : index
    %c0_21 = arith.constant 0 : index
    %c16 = arith.constant 16 : index
    %c0_22 = arith.constant 0 : index
    %19 = vector.load %arg2[%c0_20, %c0_21, %c16, %c0_22] : memref<1x1x32x32xf32, #tpu.memory_space<vmem>>, vector<1x1x8x32xf32>
    %20 = vector.shape_cast %19 : vector<1x1x8x32xf32> to vector<8x32xf32>
    %c0_23 = arith.constant 0 : index
    %c0_24 = arith.constant 0 : index
    %21 = vector.load %arg3[%c0_23, %c0_24] : memref<32x512xf32, #tpu.memory_space<vmem>>, vector<32x512xf32>
    %cst_25 = arith.constant dense<0.000000e+00> : vector<8x512xf32>
    %22 = tpu.matmul %20, %21, %cst_25 {dimension_numbers = #tpu.dot_dimension_numbers<[1], [0], [0], [1], [0, 0, 1, 1], [], []>} : vector<8x32xf32>, vector<32x512xf32>, vector<8x512xf32> -> vector<8x512xf32>
    %c0_26 = arith.constant 0 : index
    %c0_27 = arith.constant 0 : index
    %23 = vector.load %arg5[%c0_26, %c0_27] : memref<1x512xf32, #tpu.memory_space<vmem>>, vector<1x512xf32>
    %24 = vector.broadcast %23 : vector<1x512xf32> to vector<8x512xf32>
    %25 = arith.addf %22, %24 : vector<8x512xf32>
    %c16_28 = arith.constant 16 : index
    %c0_29 = arith.constant 0 : index
    %26 = vector.load %arg10[%c16_28, %c0_29] : memref<32x512xf32, #tpu.memory_space<vmem>>, vector<8x512xf32>
    tpu.vector_store %arg10[%c16_28, %c0_29], %25 {strides = array<i32>} : memref<32x512xf32, #tpu.memory_space<vmem>>, vector<8x512xf32>,
    %c0_30 = arith.constant 0 : index
    %c0_31 = arith.constant 0 : index
    %c24 = arith.constant 24 : index
    %c0_32 = arith.constant 0 : index
    %27 = vector.load %arg2[%c0_30, %c0_31, %c24, %c0_32] : memref<1x1x32x32xf32, #tpu.memory_space<vmem>>, vector<1x1x8x32xf32>
    %28 = vector.shape_cast %27 : vector<1x1x8x32xf32> to vector<8x32xf32>
    %c0_33 = arith.constant 0 : index
    %c0_34 = arith.constant 0 : index
    %29 = vector.load %arg3[%c0_33, %c0_34] : memref<32x512xf32, #tpu.memory_space<vmem>>, vector<32x512xf32>
    %cst_35 = arith.constant dense<0.000000e+00> : vector<8x512xf32>
    %30 = tpu.matmul %28, %29, %cst_35 {dimension_numbers = #tpu.dot_dimension_numbers<[1], [0], [0], [1], [0, 0, 1, 1], [], []>} : vector<8x32xf32>, vector<32x512xf32>, vector<8x512xf32> -> vector<8x512xf32>
    %c0_36 = arith.constant 0 : index
    %c0_37 = arith.constant 0 : index
    %31 = vector.load %arg5[%c0_36, %c0_37] : memref<1x512xf32, #tpu.memory_space<vmem>>, vector<1x512xf32>
    %32 = vector.broadcast %31 : vector<1x512xf32> to vector<8x512xf32>
    %33 = arith.addf %30, %32 : vector<8x512xf32>
    %c24_38 = arith.constant 24 : index
    %c0_39 = arith.constant 0 : index
    %34 = vector.load %arg10[%c24_38, %c0_39] : memref<32x512xf32, #tpu.memory_space<vmem>>, vector<8x512xf32>
    tpu.vector_store %arg10[%c24_38, %c0_39], %33 {strides = array<i32>} : memref<32x512xf32, #tpu.memory_space<vmem>>, vector<8x512xf32>,
    %c0_40 = arith.constant 0 : index
    %c0_41 = arith.constant 0 : index
    %35 = vector.load %arg11[%c0_40, %c0_41] : memref<8x128xf32, #tpu.memory_space<vmem>>, vector<8x128xf32>
    %c0_42 = arith.constant 0 : index
    %c0_43 = arith.constant 0 : index
    %36 = vector.load %arg12[%c0_42, %c0_43] : memref<8x128xf32, #tpu.memory_space<vmem>>, vector<8x128xf32>
    %c0_44 = arith.constant 0 : index
    %c0_45 = arith.constant 0 : index
    %37 = vector.load %arg13[%c0_44, %c0_45] : memref<8x128xf32, #tpu.memory_space<vmem>>, vector<8x128xf32>
    %c4_i32 = arith.constant 4 : i32
    %38 = arith.muli %arg1, %c4_i32 : i32
    %c0_i32_46 = arith.constant 0 : i32
    %39 = arith.addi %38, %c0_i32_46 : i32
    %c8_i32 = arith.constant 8 : i32
    %40 = arith.cmpi slt, %39, %c8_i32 : i32
    %41 = arith.extui %40 : i1 to i32
    %42 = arith.sitofp %41 : i32 to f32
    %c0_47 = arith.constant 0 : index
    %c0_48 = arith.constant 0 : index
    %43 = vector.load %arg10[%c0_47, %c0_48] : memref<32x512xf32, #tpu.memory_space<vmem>>, vector<8x512xf32>
    %c0_49 = arith.constant 0 : index
    %c0_50 = arith.constant 0 : index
    %44 = vector.load %arg4[%c0_49, %c0_50] : memref<128x512xf32, #tpu.memory_space<vmem>>, vector<128x512xf32>
    %cst_51 = arith.constant dense<0.000000e+00> : vector<8x512xf32>
    %45 = tpu.matmul %35, %44, %cst_51 {dimension_numbers = #tpu.dot_dimension_numbers<[1], [0], [0], [1], [0, 0, 1, 1], [], []>} : vector<8x128xf32>, vector<128x512xf32>, vector<8x512xf32> -> vector<8x512xf32>
    %46 = arith.addf %43, %45 : vector<8x512xf32>
    %47 = vector.extract_strided_slice %46 {offsets = [0, 0], sizes = [8, 128], strides = [1, 1]} : vector<8x512xf32> to vector<8x128xf32>
    %48 = arith.negf %47 : vector<8x128xf32>
    %49 = math.exp %48 : vector<8x128xf32>
    %cst_52 = arith.constant 1.000000e+00 : f32
    %50 = vector.broadcast %cst_52 : f32 to vector<8x128xf32>
    %51 = arith.addf %50, %49 : vector<8x128xf32>
    %52 = arith.divf %50, %51 : vector<8x128xf32>
    %53 = vector.extract_strided_slice %46 {offsets = [0, 128], sizes = [8, 128], strides = [1, 1]} : vector<8x512xf32> to vector<8x128xf32>
    %54 = arith.negf %53 : vector<8x128xf32>
    %55 = math.exp %54 : vector<8x128xf32>
    %cst_53 = arith.constant 1.000000e+00 : f32
    %56 = vector.broadcast %cst_53 : f32 to vector<8x128xf32>
    %57 = arith.addf %56, %55 : vector<8x128xf32>
    %58 = arith.divf %56, %57 : vector<8x128xf32>
    %59 = vector.extract_strided_slice %46 {offsets = [0, 256], sizes = [8, 128], strides = [1, 1]} : vector<8x512xf32> to vector<8x128xf32>
    %60 = math.tanh %59 : vector<8x128xf32>
    %61 = vector.extract_strided_slice %46 {offsets = [0, 384], sizes = [8, 128], strides = [1, 1]} : vector<8x512xf32> to vector<8x128xf32>
    %62 = arith.negf %61 : vector<8x128xf32>
    %63 = math.exp %62 : vector<8x128xf32>
    %cst_54 = arith.constant 1.000000e+00 : f32
    %64 = vector.broadcast %cst_54 : f32 to vector<8x128xf32>
    %65 = arith.addf %64, %63 : vector<8x128xf32>
    %66 = arith.divf %64, %65 : vector<8x128xf32>
    %67 = arith.mulf %58, %36 : vector<8x128xf32>
    %68 = arith.mulf %52, %60 : vector<8x128xf32>
    %69 = arith.addf %67, %68 : vector<8x128xf32>
    %70 = math.tanh %69 : vector<8x128xf32>
    %71 = arith.mulf %66, %70 : vector<8x128xf32>
    %72 = arith.subf %69, %36 : vector<8x128xf32>
    %73 = vector.broadcast %42 : f32 to vector<8x128xf32>
    %74 = arith.mulf %73, %72 : vector<8x128xf32>
    %75 = arith.addf %36, %74 : vector<8x128xf32>
    %76 = arith.subf %71, %35 : vector<8x128xf32>
    %77 = vector.broadcast %42 : f32 to vector<8x128xf32>
    %78 = arith.mulf %77, %76 : vector<8x128xf32>
    %79 = arith.addf %35, %78 : vector<8x128xf32>
    %80 = vector.broadcast %42 : f32 to vector<8x128xf32>
    %81 = arith.mulf %80, %71 : vector<8x128xf32>
    %82 = arith.addf %37, %81 : vector<8x128xf32>
    %c4_i32_55 = arith.constant 4 : i32
    %83 = arith.muli %arg1, %c4_i32_55 : i32
    %c1_i32 = arith.constant 1 : i32
    %84 = arith.addi %83, %c1_i32 : i32
    %c8_i32_56 = arith.constant 8 : i32
    %85 = arith.cmpi slt, %84, %c8_i32_56 : i32
    %86 = arith.extui %85 : i1 to i32
    %87 = arith.sitofp %86 : i32 to f32
    %c8_57 = arith.constant 8 : index
    %c0_58 = arith.constant 0 : index
    %88 = vector.load %arg10[%c8_57, %c0_58] : memref<32x512xf32, #tpu.memory_space<vmem>>, vector<8x512xf32>
    %c0_59 = arith.constant 0 : index
    %c0_60 = arith.constant 0 : index
    %89 = vector.load %arg4[%c0_59, %c0_60] : memref<128x512xf32, #tpu.memory_space<vmem>>, vector<128x512xf32>
    %cst_61 = arith.constant dense<0.000000e+00> : vector<8x512xf32>
    %90 = tpu.matmul %79, %89, %cst_61 {dimension_numbers = #tpu.dot_dimension_numbers<[1], [0], [0], [1], [0, 0, 1, 1], [], []>} : vector<8x128xf32>, vector<128x512xf32>, vector<8x512xf32> -> vector<8x512xf32>
    %91 = arith.addf %88, %90 : vector<8x512xf32>
    %92 = vector.extract_strided_slice %91 {offsets = [0, 0], sizes = [8, 128], strides = [1, 1]} : vector<8x512xf32> to vector<8x128xf32>
    %93 = arith.negf %92 : vector<8x128xf32>
    %94 = math.exp %93 : vector<8x128xf32>
    %cst_62 = arith.constant 1.000000e+00 : f32
    %95 = vector.broadcast %cst_62 : f32 to vector<8x128xf32>
    %96 = arith.addf %95, %94 : vector<8x128xf32>
    %97 = arith.divf %95, %96 : vector<8x128xf32>
    %98 = vector.extract_strided_slice %91 {offsets = [0, 128], sizes = [8, 128], strides = [1, 1]} : vector<8x512xf32> to vector<8x128xf32>
    %99 = arith.negf %98 : vector<8x128xf32>
    %100 = math.exp %99 : vector<8x128xf32>
    %cst_63 = arith.constant 1.000000e+00 : f32
    %101 = vector.broadcast %cst_63 : f32 to vector<8x128xf32>
    %102 = arith.addf %101, %100 : vector<8x128xf32>
    %103 = arith.divf %101, %102 : vector<8x128xf32>
    %104 = vector.extract_strided_slice %91 {offsets = [0, 256], sizes = [8, 128], strides = [1, 1]} : vector<8x512xf32> to vector<8x128xf32>
    %105 = math.tanh %104 : vector<8x128xf32>
    %106 = vector.extract_strided_slice %91 {offsets = [0, 384], sizes = [8, 128], strides = [1, 1]} : vector<8x512xf32> to vector<8x128xf32>
    %107 = arith.negf %106 : vector<8x128xf32>
    %108 = math.exp %107 : vector<8x128xf32>
    %cst_64 = arith.constant 1.000000e+00 : f32
    %109 = vector.broadcast %cst_64 : f32 to vector<8x128xf32>
    %110 = arith.addf %109, %108 : vector<8x128xf32>
    %111 = arith.divf %109, %110 : vector<8x128xf32>
    %112 = arith.mulf %103, %75 : vector<8x128xf32>
    %113 = arith.mulf %97, %105 : vector<8x128xf32>
    %114 = arith.addf %112, %113 : vector<8x128xf32>
    %115 = math.tanh %114 : vector<8x128xf32>
    %116 = arith.mulf %111, %115 : vector<8x128xf32>
    %117 = arith.subf %114, %75 : vector<8x128xf32>
    %118 = vector.broadcast %87 : f32 to vector<8x128xf32>
    %119 = arith.mulf %118, %117 : vector<8x128xf32>
    %120 = arith.addf %75, %119 : vector<8x128xf32>
    %121 = arith.subf %116, %79 : vector<8x128xf32>
    %122 = vector.broadcast %87 : f32 to vector<8x128xf32>
    %123 = arith.mulf %122, %121 : vector<8x128xf32>
    %124 = arith.addf %79, %123 : vector<8x128xf32>
    %125 = vector.broadcast %87 : f32 to vector<8x128xf32>
    %126 = arith.mulf %125, %116 : vector<8x128xf32>
    %127 = arith.addf %82, %126 : vector<8x128xf32>
    %c4_i32_65 = arith.constant 4 : i32
    %128 = arith.muli %arg1, %c4_i32_65 : i32
    %c2_i32 = arith.constant 2 : i32
    %129 = arith.addi %128, %c2_i32 : i32
    %c8_i32_66 = arith.constant 8 : i32
    %130 = arith.cmpi slt, %129, %c8_i32_66 : i32
    %131 = arith.extui %130 : i1 to i32
    %132 = arith.sitofp %131 : i32 to f32
    %c16_67 = arith.constant 16 : index
    %c0_68 = arith.constant 0 : index
    %133 = vector.load %arg10[%c16_67, %c0_68] : memref<32x512xf32, #tpu.memory_space<vmem>>, vector<8x512xf32>
    %c0_69 = arith.constant 0 : index
    %c0_70 = arith.constant 0 : index
    %134 = vector.load %arg4[%c0_69, %c0_70] : memref<128x512xf32, #tpu.memory_space<vmem>>, vector<128x512xf32>
    %cst_71 = arith.constant dense<0.000000e+00> : vector<8x512xf32>
    %135 = tpu.matmul %124, %134, %cst_71 {dimension_numbers = #tpu.dot_dimension_numbers<[1], [0], [0], [1], [0, 0, 1, 1], [], []>} : vector<8x128xf32>, vector<128x512xf32>, vector<8x512xf32> -> vector<8x512xf32>
    %136 = arith.addf %133, %135 : vector<8x512xf32>
    %137 = vector.extract_strided_slice %136 {offsets = [0, 0], sizes = [8, 128], strides = [1, 1]} : vector<8x512xf32> to vector<8x128xf32>
    %138 = arith.negf %137 : vector<8x128xf32>
    %139 = math.exp %138 : vector<8x128xf32>
    %cst_72 = arith.constant 1.000000e+00 : f32
    %140 = vector.broadcast %cst_72 : f32 to vector<8x128xf32>
    %141 = arith.addf %140, %139 : vector<8x128xf32>
    %142 = arith.divf %140, %141 : vector<8x128xf32>
    %143 = vector.extract_strided_slice %136 {offsets = [0, 128], sizes = [8, 128], strides = [1, 1]} : vector<8x512xf32> to vector<8x128xf32>
    %144 = arith.negf %143 : vector<8x128xf32>
    %145 = math.exp %144 : vector<8x128xf32>
    %cst_73 = arith.constant 1.000000e+00 : f32
    %146 = vector.broadcast %cst_73 : f32 to vector<8x128xf32>
    %147 = arith.addf %146, %145 : vector<8x128xf32>
    %148 = arith.divf %146, %147 : vector<8x128xf32>
    %149 = vector.extract_strided_slice %136 {offsets = [0, 256], sizes = [8, 128], strides = [1, 1]} : vector<8x512xf32> to vector<8x128xf32>
    %150 = math.tanh %149 : vector<8x128xf32>
    %151 = vector.extract_strided_slice %136 {offsets = [0, 384], sizes = [8, 128], strides = [1, 1]} : vector<8x512xf32> to vector<8x128xf32>
    %152 = arith.negf %151 : vector<8x128xf32>
    %153 = math.exp %152 : vector<8x128xf32>
    %cst_74 = arith.constant 1.000000e+00 : f32
    %154 = vector.broadcast %cst_74 : f32 to vector<8x128xf32>
    %155 = arith.addf %154, %153 : vector<8x128xf32>
    %156 = arith.divf %154, %155 : vector<8x128xf32>
    %157 = arith.mulf %148, %120 : vector<8x128xf32>
    %158 = arith.mulf %142, %150 : vector<8x128xf32>
    %159 = arith.addf %157, %158 : vector<8x128xf32>
    %160 = math.tanh %159 : vector<8x128xf32>
    %161 = arith.mulf %156, %160 : vector<8x128xf32>
    %162 = arith.subf %159, %120 : vector<8x128xf32>
    %163 = vector.broadcast %132 : f32 to vector<8x128xf32>
    %164 = arith.mulf %163, %162 : vector<8x128xf32>
    %165 = arith.addf %120, %164 : vector<8x128xf32>
    %166 = arith.subf %161, %124 : vector<8x128xf32>
    %167 = vector.broadcast %132 : f32 to vector<8x128xf32>
    %168 = arith.mulf %167, %166 : vector<8x128xf32>
    %169 = arith.addf %124, %168 : vector<8x128xf32>
    %170 = vector.broadcast %132 : f32 to vector<8x128xf32>
    %171 = arith.mulf %170, %161 : vector<8x128xf32>
    %172 = arith.addf %127, %171 : vector<8x128xf32>
    %c4_i32_75 = arith.constant 4 : i32
    %173 = arith.muli %arg1, %c4_i32_75 : i32
    %c3_i32 = arith.constant 3 : i32
    %174 = arith.addi %173, %c3_i32 : i32
    %c8_i32_76 = arith.constant 8 : i32
    %175 = arith.cmpi slt, %174, %c8_i32_76 : i32
    %176 = arith.extui %175 : i1 to i32
    %177 = arith.sitofp %176 : i32 to f32
    %c24_77 = arith.constant 24 : index
    %c0_78 = arith.constant 0 : index
    %178 = vector.load %arg10[%c24_77, %c0_78] : memref<32x512xf32, #tpu.memory_space<vmem>>, vector<8x512xf32>
    %c0_79 = arith.constant 0 : index
    %c0_80 = arith.constant 0 : index
    %179 = vector.load %arg4[%c0_79, %c0_80] : memref<128x512xf32, #tpu.memory_space<vmem>>, vector<128x512xf32>
    %cst_81 = arith.constant dense<0.000000e+00> : vector<8x512xf32>
    %180 = tpu.matmul %169, %179, %cst_81 {dimension_numbers = #tpu.dot_dimension_numbers<[1], [0], [0], [1], [0, 0, 1, 1], [], []>} : vector<8x128xf32>, vector<128x512xf32>, vector<8x512xf32> -> vector<8x512xf32>
    %181 = arith.addf %178, %180 : vector<8x512xf32>
    %182 = vector.extract_strided_slice %181 {offsets = [0, 0], sizes = [8, 128], strides = [1, 1]} : vector<8x512xf32> to vector<8x128xf32>
    %183 = arith.negf %182 : vector<8x128xf32>
    %184 = math.exp %183 : vector<8x128xf32>
    %cst_82 = arith.constant 1.000000e+00 : f32
    %185 = vector.broadcast %cst_82 : f32 to vector<8x128xf32>
    %186 = arith.addf %185, %184 : vector<8x128xf32>
    %187 = arith.divf %185, %186 : vector<8x128xf32>
    %188 = vector.extract_strided_slice %181 {offsets = [0, 128], sizes = [8, 128], strides = [1, 1]} : vector<8x512xf32> to vector<8x128xf32>
    %189 = arith.negf %188 : vector<8x128xf32>
    %190 = math.exp %189 : vector<8x128xf32>
    %cst_83 = arith.constant 1.000000e+00 : f32
    %191 = vector.broadcast %cst_83 : f32 to vector<8x128xf32>
    %192 = arith.addf %191, %190 : vector<8x128xf32>
    %193 = arith.divf %191, %192 : vector<8x128xf32>
    %194 = vector.extract_strided_slice %181 {offsets = [0, 256], sizes = [8, 128], strides = [1, 1]} : vector<8x512xf32> to vector<8x128xf32>
    %195 = math.tanh %194 : vector<8x128xf32>
    %196 = vector.extract_strided_slice %181 {offsets = [0, 384], sizes = [8, 128], strides = [1, 1]} : vector<8x512xf32> to vector<8x128xf32>
    %197 = arith.negf %196 : vector<8x128xf32>
    %198 = math.exp %197 : vector<8x128xf32>
    %cst_84 = arith.constant 1.000000e+00 : f32
    %199 = vector.broadcast %cst_84 : f32 to vector<8x128xf32>
    %200 = arith.addf %199, %198 : vector<8x128xf32>
    %201 = arith.divf %199, %200 : vector<8x128xf32>
    %202 = arith.mulf %193, %165 : vector<8x128xf32>
    %203 = arith.mulf %187, %195 : vector<8x128xf32>
    %204 = arith.addf %202, %203 : vector<8x128xf32>
    %205 = math.tanh %204 : vector<8x128xf32>
    %206 = arith.mulf %201, %205 : vector<8x128xf32>
    %207 = arith.subf %204, %165 : vector<8x128xf32>
    %208 = vector.broadcast %177 : f32 to vector<8x128xf32>
    %209 = arith.mulf %208, %207 : vector<8x128xf32>
    %210 = arith.addf %165, %209 : vector<8x128xf32>
    %211 = arith.subf %206, %169 : vector<8x128xf32>
    %212 = vector.broadcast %177 : f32 to vector<8x128xf32>
    %213 = arith.mulf %212, %211 : vector<8x128xf32>
    %214 = arith.addf %169, %213 : vector<8x128xf32>
    %215 = vector.broadcast %177 : f32 to vector<8x128xf32>
    %216 = arith.mulf %215, %206 : vector<8x128xf32>
    %217 = arith.addf %172, %216 : vector<8x128xf32>
    %c0_85 = arith.constant 0 : index
    %c0_86 = arith.constant 0 : index
    %218 = vector.load %arg11[%c0_85, %c0_86] : memref<8x128xf32, #tpu.memory_space<vmem>>, vector<8x128xf32>
    tpu.vector_store %arg11[%c0_85, %c0_86], %214 {strides = array<i32>} : memref<8x128xf32, #tpu.memory_space<vmem>>, vector<8x128xf32>,
    %c0_87 = arith.constant 0 : index
    %c0_88 = arith.constant 0 : index
    %219 = vector.load %arg12[%c0_87, %c0_88] : memref<8x128xf32, #tpu.memory_space<vmem>>, vector<8x128xf32>
    tpu.vector_store %arg12[%c0_87, %c0_88], %210 {strides = array<i32>} : memref<8x128xf32, #tpu.memory_space<vmem>>, vector<8x128xf32>,
    %c0_89 = arith.constant 0 : index
    %c0_90 = arith.constant 0 : index
    %220 = vector.load %arg13[%c0_89, %c0_90] : memref<8x128xf32, #tpu.memory_space<vmem>>, vector<8x128xf32>
    tpu.vector_store %arg13[%c0_89, %c0_90], %217 {strides = array<i32>} : memref<8x128xf32, #tpu.memory_space<vmem>>, vector<8x128xf32>,
    %c1_i32_91 = arith.constant 1 : i32
    %221 = arith.cmpi eq, %arg1, %c1_i32_91 : i32
    %222 = arith.extui %221 : i1 to i32
    %c0_i32_92 = arith.constant 0 : i32
    %223 = arith.cmpi ne, %222, %c0_i32_92 : i32
    scf.if %223 {
      %cst_93 = arith.constant 1.250000e-01 : f32
      %224 = vector.broadcast %cst_93 : f32 to vector<8x128xf32>
      %225 = arith.mulf %217, %224 : vector<8x128xf32>
      %c0_94 = arith.constant 0 : index
      %c0_95 = arith.constant 0 : index
      %226 = vector.load %arg9[%c0_94, %c0_95] : memref<8x128xf32, #tpu.memory_space<vmem>>, vector<8x128xf32>
      tpu.vector_store %arg9[%c0_94, %c0_95], %225 {strides = array<i32>} : memref<8x128xf32, #tpu.memory_space<vmem>>, vector<8x128xf32>,
      %c0_96 = arith.constant 0 : index
      %c0_97 = arith.constant 0 : index
      %227 = vector.load %arg6[%c0_96, %c0_97] : memref<128x128xf32, #tpu.memory_space<vmem>>, vector<128x128xf32>
      %cst_98 = arith.constant dense<0.000000e+00> : vector<8x128xf32>
      %228 = tpu.matmul %225, %227, %cst_98 {dimension_numbers = #tpu.dot_dimension_numbers<[1], [0], [0], [1], [0, 0, 1, 1], [], []>} : vector<8x128xf32>, vector<128x128xf32>, vector<8x128xf32> -> vector<8x128xf32>
      %c0_99 = arith.constant 0 : index
      %c0_100 = arith.constant 0 : index
      %229 = vector.load %arg7[%c0_99, %c0_100] : memref<1x128xf32, #tpu.memory_space<vmem>>, vector<1x128xf32>
      %230 = vector.broadcast %229 : vector<1x128xf32> to vector<8x128xf32>
      %231 = arith.addf %228, %230 : vector<8x128xf32>
      %c0_101 = arith.constant 0 : index
      %c0_102 = arith.constant 0 : index
      %232 = vector.load %arg8[%c0_101, %c0_102] : memref<8x128xf32, #tpu.memory_space<vmem>>, vector<8x128xf32>
      tpu.vector_store %arg8[%c0_101, %c0_102], %231 {strides = array<i32>} : memref<8x128xf32, #tpu.memory_space<vmem>>, vector<8x128xf32>,
    } else {
    }
    return
  }
  func.func @transform_0(%arg0: i32, %arg1: i32) -> (i32, i32, i32, i32) {
    %c0_i32 = arith.constant 0 : i32
    %c0_i32_0 = arith.constant 0 : i32
    %c0_i32_1 = arith.constant 0 : i32
    return %arg1, %arg0, %c0_i32, %c0_i32_0 : i32, i32, i32, i32
  }
  func.func @transform_1(%arg0: i32, %arg1: i32) -> (i32, i32) {
    %c0_i32 = arith.constant 0 : i32
    %c0_i32_0 = arith.constant 0 : i32
    %c0_i32_1 = arith.constant 0 : i32
    return %c0_i32, %c0_i32_0 : i32, i32
  }
  func.func @transform_2(%arg0: i32, %arg1: i32) -> (i32, i32) {
    %c0_i32 = arith.constant 0 : i32
    %c0_i32_0 = arith.constant 0 : i32
    %c0_i32_1 = arith.constant 0 : i32
    return %c0_i32, %c0_i32_0 : i32, i32
  }
  func.func @transform_3(%arg0: i32, %arg1: i32) -> (i32, i32) {
    %c0_i32 = arith.constant 0 : i32
    %c0_i32_0 = arith.constant 0 : i32
    %c0_i32_1 = arith.constant 0 : i32
    return %c0_i32, %c0_i32_0 : i32, i32
  }
  func.func @transform_4(%arg0: i32, %arg1: i32) -> (i32, i32) {
    %c0_i32 = arith.constant 0 : i32
    %c0_i32_0 = arith.constant 0 : i32
    %c0_i32_1 = arith.constant 0 : i32
    return %c0_i32, %c0_i32_0 : i32, i32
  }
  func.func @transform_5(%arg0: i32, %arg1: i32) -> (i32, i32) {
    %c0_i32 = arith.constant 0 : i32
    %c0_i32_0 = arith.constant 0 : i32
    %c0_i32_1 = arith.constant 0 : i32
    return %c0_i32, %c0_i32_0 : i32, i32
  }
  func.func @transform_6(%arg0: i32, %arg1: i32) -> (i32, i32) {
    %c0_i32 = arith.constant 0 : i32
    %c0_i32_0 = arith.constant 0 : i32
    return %arg0, %c0_i32 : i32, i32
  }
  func.func @transform_7(%arg0: i32, %arg1: i32) -> (i32, i32) {
    %c0_i32 = arith.constant 0 : i32
    %c0_i32_0 = arith.constant 0 : i32
    return %arg0, %c0_i32 : i32, i32
  }
}

</mosaic_0001>

<llo_original>
// kernel: tpu_custom_call.1
$region0: #{tpu_custom_call.1}
  #allocation0 [shape = 'u32[]', space=smem, size = 0x4, offset = 0x4, fixed_abs, tag = 'smem constant byte address 0x4 - core index']
  #allocation1 [shape = 'u32[144,128]{1,0:T(1,128)}', space=vmem, size = 0x12000, scoped, tag = 'internal scratch']
  #allocation2 [shape = 'f32[32,512]{1,0:T(8,128)}', space=vmem, size = 0x10000, scoped, tag = 'scratch operand']
  #allocation3 [shape = 'f32[8,128]{1,0:T(8,128)}', space=vmem, size = 0x1000, scoped, tag = 'scratch operand']
  #allocation4 [shape = 'f32[8,128]{1,0:T(8,128)}', space=vmem, size = 0x1000, scoped, tag = 'scratch operand']
  #allocation5 [shape = 'f32[8,128]{1,0:T(8,128)}', space=vmem, size = 0x1000, scoped, tag = 'scratch operand']
  %s0 = inlined_call_operand.hbm [shape: f32[2,1,32,32], index: 0, kind: input, shape index: {}]
  %s1 = inlined_call_operand.hbm [shape: f32[32,512], index: 1, kind: input, shape index: {}]
  %s2 = inlined_call_operand.hbm [shape: f32[128,512], index: 2, kind: input, shape index: {}]
  %s3 = inlined_call_operand.vmem [shape: f32[1,512], index: 3, kind: input, shape index: {}]
  %s4 = inlined_call_operand.hbm [shape: f32[128,128], index: 4, kind: input, shape index: {}]
  %s5 = inlined_call_operand.vmem [shape: f32[1,128], index: 5, kind: input, shape index: {}]
  %s6 = inlined_call_operand.hbm [shape: f32[8,128], index: 6, kind: output, shape index: {0}]
  %s7 = inlined_call_operand.hbm [shape: f32[8,128], index: 7, kind: output, shape index: {1}]
  %8 = xla_tuple %s6, %s7
  %s9 = sld [smem:[#allocation0]]
  $region89: #{tpu_custom_call.1} parent=0
    _
  %s11 = ssub.s32 1, %s9
  %s12 = scalar_select 0, %s11, %s9
  $region1: #{tpu_custom_call.1} parent=0
    #allocation6 [shape = 'u8[32768]{0}', space=vmem, size = 0x8000, scoped, tag = 'input window, operand 0']
    #allocation7 [shape = 's32[2]{0}', space=sflag, size = 0x8, scoped, tag = 'scoped memory for tpu_custom_call.1']
    #allocation8 [shape = 's32[2]{0}', space=sflag, size = 0x8, scoped, tag = 'scoped memory for tpu_custom_call.1']
    #allocation9 [shape = 'u8[65536]{0}', space=vmem, size = 0x10000, scoped, tag = 'input window, operand 1, single buffered']
    #allocation10 [shape = 's32[1]{0}', space=sflag, size = 0x4, scoped, tag = 'scoped memory for tpu_custom_call.1']
    #allocation11 [shape = 'u8[262144]{0}', space=vmem, size = 0x40000, scoped, tag = 'input window, operand 2, single buffered']
    #allocation12 [shape = 'u8[65536]{0}', space=vmem, size = 0x10000, scoped, tag = 'input window, operand 4, single buffered']
    #allocation13 [shape = 's32[1]{0}', space=sflag, size = 0x4, scoped, tag = 'scoped memory for tpu_custom_call.1']
    #allocation14 [shape = 'u8[4096]{0}', space=vmem, size = 0x1000, scoped, tag = 'output window, operand 0, single buffered']
    #allocation15 [shape = 'u8[4096]{0}', space=vmem, size = 0x1000, scoped, tag = 'output window, operand 1, single buffered']
    #allocation16 [shape = 's32[1]{0}', space=sflag, size = 0x4, scoped, tag = 'scoped memory for tpu_custom_call.1']
    %13 = vsyncpa [#allocation7], 0
    %s14 = scalar_lea.sflag [#allocation7], 1
    %15 = vsyncpa %s14, 0
    %16 = vsyncpa [#allocation10], 0
    %17 = vsyncpa [#allocation13], 0
    %18 = vsyncpa [#allocation8], 0
    %19 = vsyncpa [#allocation16], 0
    loop: start=0, step=1, limit=4
    $region2: #{tpu_custom_call.1} parent=1 // loop_pre_header
      _
    $region3: #{tpu_custom_call.1} parent=1 // loop_header
      %s21 = sphi 0, %s25
      %p22 = scmp.ge.s32.totalorder %s21, 4
      %s28 = sphi 0, %s40
      %s29 = sphi 0, %s36
      %s30 = sphi 0, %s28
      %s31 = sphi 0, %s29
      %s32 = sphi 0, %s30
      %s33 = sphi 0, %s31
      %s45 = sphi 0, %s47
      %s48 = sphi 0, %s45
      %s49 = sphi 0, %s48
      %s65 = sphi 0, %s49
      %s69 = sphi 0, %s69
      %s71 = sphi 0, %s69
      %s72 = sphi 0, %s71
      %s86 = sphi 0, %s72
      %s90 = sphi 0, %s90
      %s92 = sphi 0, %s90
      %s93 = sphi 0, %s92
      %s107 = sphi 0, %s93
      %s111 = sphi 0, %s111
      %s113 = sphi 0, %s111
      %s114 = sphi 0, %s113
      %s128 = sphi 0, %s114
      %s132 = sphi 0, %s132
      %s134 = sphi 0, %s132
      %s135 = sphi 0, %s134
      %s149 = sphi 0, %s135
      %s153 = sphi 0, %s153
      %s155 = sphi 0, %s153
      %s156 = sphi 0, %s155
      %s170 = sphi 0, %s156
      %s176 = sphi 0, %s178
      %s179 = sphi 0, %s176
      %s180 = sphi 0, %s179
      %s196 = sphi 0, %s180
      %s202 = sphi 0, %s204
      %s205 = sphi 0, %s202
      %s206 = sphi 0, %s205
      %s222 = sphi 0, %s206
    $region4: #{tpu_custom_call.1} parent=1 // loop_header_branch
      %24 = sbr.rel (%p22) target = $region8
    $region5: #{tpu_custom_call.1} parent=1 // loop_body
      %s26 = ssub.s32 %s21, 1
      %s27 = ssub.s32 %s21, 2
      %s34 = sadd.s32 1, %s29
      %p35 = scmp.ge.s32.totalorder %s34, 2
      %s36 = scalar_select %p35, 0, %s34
      %s37 = sadd.s32 1, %s28
      %s38 = scalar_select %p35, %s37, %s28
      %p39 = scmp.ge.s32.totalorder %s38, 1
      %s40 = scalar_select %p39, 0, %s38
      %s41 = ssub.s32 %s29, %s36
      %s42 = ssub.s32 %s28, %s40
      %s43 = sor.u32 %s41, %s42
      %p44 = scmp.eq.s32.totalorder %s43, 0
      %s46 = sadd.s32 %s45, 1
      %s47 = scalar_select %p44, %s45, %s46
      %p50 = pneg %p44
      %p51 = scmp.eq.s32.totalorder %s21, 1
      %p52 = por %p50, %p51
      %p53 = scmp.ne.s32.totalorder %s45, %s48
      %p54 = scmp.eq.s32.totalorder %s21, 0
      %p55 = por %p53, %p54
      %p56 = scmp.ne.s32.totalorder %s45, %s48
      %p57 = scmp.eq.s32.totalorder %s26, 1
      %p58 = por %p56, %p57
      %p59 = scmp.ne.s32.totalorder %s48, %s49
      %p60 = scmp.eq.s32.totalorder %s26, 0
      %p61 = por %p59, %p60
      %p62 = scmp.ne.s32.totalorder %s48, %s49
      %p63 = scmp.eq.s32.totalorder %s27, 1
      %p64 = por %p62, %p63
      %p66 = scmp.ne.s32.totalorder %s49, %s65
      %p67 = scmp.eq.s32.totalorder %s27, 0
      %p68 = por %p66, %p67
      %s70 = sadd.s32 %s69, 1
      %p73 = scmp.eq.s32.totalorder %s21, 1
      %p74 = scmp.ne.s32.totalorder %s69, %s71
      %p75 = scmp.eq.s32.totalorder %s21, 0
      %p76 = por %p74, %p75
      %p77 = scmp.ne.s32.totalorder %s69, %s71
      %p78 = scmp.eq.s32.totalorder %s26, 1
      %p79 = por %p77, %p78
      %p80 = scmp.ne.s32.totalorder %s71, %s72
      %p81 = scmp.eq.s32.totalorder %s26, 0
      %p82 = por %p80, %p81
      %p83 = scmp.ne.s32.totalorder %s71, %s72
      %p84 = scmp.eq.s32.totalorder %s27, 1
      %p85 = por %p83, %p84
      %p87 = scmp.ne.s32.totalorder %s72, %s86
      %p88 = scmp.eq.s32.totalorder %s27, 0
      %p89 = por %p87, %p88
      %s91 = sadd.s32 %s90, 1
      %p94 = scmp.eq.s32.totalorder %s21, 1
      %p95 = scmp.ne.s32.totalorder %s90, %s92
      %p96 = scmp.eq.s32.totalorder %s21, 0
      %p97 = por %p95, %p96
      %p98 = scmp.ne.s32.totalorder %s90, %s92
      %p99 = scmp.eq.s32.totalorder %s26, 1
      %p100 = por %p98, %p99
      %p101 = scmp.ne.s32.totalorder %s92, %s93
      %p102 = scmp.eq.s32.totalorder %s26, 0
      %p103 = por %p101, %p102
      %p104 = scmp.ne.s32.totalorder %s92, %s93
      %p105 = scmp.eq.s32.totalorder %s27, 1
      %p106 = por %p104, %p105
      %p108 = scmp.ne.s32.totalorder %s93, %s107
      %p109 = scmp.eq.s32.totalorder %s27, 0
      %p110 = por %p108, %p109
      %s112 = sadd.s32 %s111, 1
      %p115 = scmp.eq.s32.totalorder %s21, 1
      %p116 = scmp.ne.s32.totalorder %s111, %s113
      %p117 = scmp.eq.s32.totalorder %s21, 0
      %p118 = por %p116, %p117
      %p119 = scmp.ne.s32.totalorder %s111, %s113
      %p120 = scmp.eq.s32.totalorder %s26, 1
      %p121 = por %p119, %p120
      %p122 = scmp.ne.s32.totalorder %s113, %s114
      %p123 = scmp.eq.s32.totalorder %s26, 0
      %p124 = por %p122, %p123
      %p125 = scmp.ne.s32.totalorder %s113, %s114
      %p126 = scmp.eq.s32.totalorder %s27, 1
      %p127 = por %p125, %p126
      %p129 = scmp.ne.s32.totalorder %s114, %s128
      %p130 = scmp.eq.s32.totalorder %s27, 0
      %p131 = por %p129, %p130
      %s133 = sadd.s32 %s132, 1
      %p136 = scmp.eq.s32.totalorder %s21, 1
      %p137 = scmp.ne.s32.totalorder %s132, %s134
      %p138 = scmp.eq.s32.totalorder %s21, 0
      %p139 = por %p137, %p138
      %p140 = scmp.ne.s32.totalorder %s132, %s134
      %p141 = scmp.eq.s32.totalorder %s26, 1
      %p142 = por %p140, %p141
      %p143 = scmp.ne.s32.totalorder %s134, %s135
      %p144 = scmp.eq.s32.totalorder %s26, 0
      %p145 = por %p143, %p144
      %p146 = scmp.ne.s32.totalorder %s134, %s135
      %p147 = scmp.eq.s32.totalorder %s27, 1
      %p148 = por %p146, %p147
      %p150 = scmp.ne.s32.totalorder %s135, %s149
      %p151 = scmp.eq.s32.totalorder %s27, 0
      %p152 = por %p150, %p151
      %s154 = sadd.s32 %s153, 1
      %p157 = scmp.eq.s32.totalorder %s21, 1
      %p158 = scmp.ne.s32.totalorder %s153, %s155
      %p159 = scmp.eq.s32.totalorder %s21, 0
      %p160 = por %p158, %p159
      %p161 = scmp.ne.s32.totalorder %s153, %s155
      %p162 = scmp.eq.s32.totalorder %s26, 1
      %p163 = por %p161, %p162
      %p164 = scmp.ne.s32.totalorder %s155, %s156
      %p165 = scmp.eq.s32.totalorder %s26, 0
      %p166 = por %p164, %p165
      %p167 = scmp.ne.s32.totalorder %s155, %s156
      %p168 = scmp.eq.s32.totalorder %s27, 1
      %p169 = por %p167, %p168
      %p171 = scmp.ne.s32.totalorder %s156, %s170
      %p172 = scmp.eq.s32.totalorder %s27, 0
      %p173 = por %p171, %p172
      %s174 = ssub.s32 %s28, %s40
      %p175 = scmp.eq.s32.totalorder %s174, 0
      %s177 = sadd.s32 %s176, 1
      %s178 = scalar_select %p175, %s176, %s177
      %p181 = pneg %p175
      %p182 = scmp.eq.s32.totalorder %s21, 1
      %p183 = por %p181, %p182
      %p184 = scmp.ne.s32.totalorder %s176, %s179
      %p185 = scmp.eq.s32.totalorder %s21, 0
      %p186 = por %p184, %p185
      %p187 = scmp.ne.s32.totalorder %s176, %s179
      %p188 = scmp.eq.s32.totalorder %s26, 1
      %p189 = por %p187, %p188
      %p190 = scmp.ne.s32.totalorder %s179, %s180
      %p191 = scmp.eq.s32.totalorder %s26, 0
      %p192 = por %p190, %p191
      %p193 = scmp.ne.s32.totalorder %s179, %s180
      %p194 = scmp.eq.s32.totalorder %s27, 1
      %p195 = por %p193, %p194
      %p197 = scmp.ne.s32.totalorder %s180, %s196
      %p198 = scmp.eq.s32.totalorder %s27, 0
      %p199 = por %p197, %p198
      %s200 = ssub.s32 %s28, %s40
      %p201 = scmp.eq.s32.totalorder %s200, 0
      %s203 = sadd.s32 %s202, 1
      %s204 = scalar_select %p201, %s202, %s203
      %p207 = pneg %p201
      %p208 = scmp.eq.s32.totalorder %s21, 1
      %p209 = por %p207, %p208
      %p210 = scmp.ne.s32.totalorder %s202, %s205
      %p211 = scmp.eq.s32.totalorder %s21, 0
      %p212 = por %p210, %p211
      %p213 = scmp.ne.s32.totalorder %s202, %s205
      %p214 = scmp.eq.s32.totalorder %s26, 1
      %p215 = por %p213, %p214
      %p216 = scmp.ne.s32.totalorder %s205, %s206
      %p217 = scmp.eq.s32.totalorder %s26, 0
      %p218 = por %p216, %p217
      %p219 = scmp.ne.s32.totalorder %s205, %s206
      %p220 = scmp.eq.s32.totalorder %s27, 1
      %p221 = por %p219, %p220
      %p223 = scmp.ne.s32.totalorder %s206, %s222
      %p224 = scmp.eq.s32.totalorder %s27, 0
      %p225 = por %p223, %p224
      %p226 = scmp.le.s32.totalorder 1, %s21
      %p227 = scmp.lt.s32.totalorder %s21, 3
      %p228 = pnand %p226, %p227
      %p229 = pneg %p228
      // Predicated region
      $region9: #{tpu_custom_call.1} parent=5 // pred_check
        _
      $region10: #{tpu_custom_call.1} parent=5 // pred_check_branch
        %231 = sbr.rel (%p228) target = $region12
      $region11: #{tpu_custom_call.1} parent=5 // pred_region
        %s232 = ssub.s32 %s21, 1
        // Predicated region
        $region13: #{tpu_custom_call.1} parent=11 // pred_check
          %p233 = pneg %p82
        $region14: #{tpu_custom_call.1} parent=11 // pred_check_branch
          %235 = sbr.rel (%p233) target = $region16
        $region15: #{tpu_custom_call.1} parent=11 // pred_region
          %s237 = ssub.s32 2048, 2048
          %238 = vsyncadd [#allocation10], %s237
          %s239 = sshll.u32 [#allocation9], 4
          %s240 = int_to_ptr.vmem [resolvable:$true] %s239
          %245 = dma.hbm_to_vmem [thread:$0]  %s1, 2048, %s240, [#allocation10], 512, 512, 32
        $region16: #{tpu_custom_call.1} parent=11 // pred_fallthru
          _
        // Predicated region
        $region17: #{tpu_custom_call.1} parent=11 // pred_check
          %p246 = pneg %p103
        $region18: #{tpu_custom_call.1} parent=11 // pred_check_branch
          %248 = sbr.rel (%p246) target = $region20
        $region19: #{tpu_custom_call.1} parent=11 // pred_region
          %s250 = ssub.s32 8192, 8192
          %251 = vsyncadd [#allocation10], %s250
          %s252 = sshll.u32 [#allocation11], 4
          %s253 = int_to_ptr.vmem [resolvable:$true] %s252
          %258 = dma.hbm_to_vmem [thread:$0]  %s2, 8192, %s253, [#allocation10], 512, 512, 32
        $region20: #{tpu_custom_call.1} parent=11 // pred_fallthru
          _
        // Predicated region
        $region21: #{tpu_custom_call.1} parent=11 // pred_check
          %p259 = pneg %p124
        $region22: #{tpu_custom_call.1} parent=11 // pred_check_branch
          %261 = sbr.rel (%p259) target = $region24
        $region23: #{tpu_custom_call.1} parent=11 // pred_region
          _
        $region24: #{tpu_custom_call.1} parent=11 // pred_fallthru
          _
        // Predicated region
        $region25: #{tpu_custom_call.1} parent=11 // pred_check
          %p262 = pneg %p145
        $region26: #{tpu_custom_call.1} parent=11 // pred_check_branch
          %264 = sbr.rel (%p262) target = $region28
        $region27: #{tpu_custom_call.1} parent=11 // pred_region
          %s266 = ssub.s32 2048, 2048
          %267 = vsyncadd [#allocation13], %s266
          %s268 = sshll.u32 [#allocation12], 4
          %s269 = int_to_ptr.vmem [resolvable:$true] %s268
          %274 = dma.hbm_to_vmem [thread:$0]  %s4, 2048, %s269, [#allocation13], 128, 128, 8
        $region28: #{tpu_custom_call.1} parent=11 // pred_fallthru
          _
        // Predicated region
        $region29: #{tpu_custom_call.1} parent=11 // pred_check
          %p275 = pneg %p166
        $region30: #{tpu_custom_call.1} parent=11 // pred_check_branch
          %277 = sbr.rel (%p275) target = $region32
        $region31: #{tpu_custom_call.1} parent=11 // pred_region
          _
        $region32: #{tpu_custom_call.1} parent=11 // pred_fallthru
          _
      $region12: #{tpu_custom_call.1} parent=5 // pred_fallthru
        _
      %p278 = scmp.lt.s32.totalorder %s21, 2
      // Predicated region
      $region33: #{tpu_custom_call.1} parent=5 // pred_check
        %p279 = pneg %p278
      $region34: #{tpu_custom_call.1} parent=5 // pred_check_branch
        %281 = sbr.rel (%p279) target = $region36
      $region35: #{tpu_custom_call.1} parent=5 // pred_region
        // Predicated region
        $region37: #{tpu_custom_call.1} parent=35 // pred_check
          %p282 = pneg %p55
        $region38: #{tpu_custom_call.1} parent=35 // pred_check_branch
          %284 = sbr.rel (%p282) target = $region40
        $region39: #{tpu_custom_call.1} parent=35 // pred_region
          %s285 = sand.u32 %s45, 1
          %s286 = scalar_lea.sflag [#allocation7], %s285
          %s287 = sand.u32 %s45, 1
          %s288 = smul.addr %s287, 32
          %s289 = scalar_lea.vmem [#allocation6], %s288
          %s291 = ssub.s32 512, 512
          %292 = vsyncadd %s286, %s291
          %s293 = smul.addr %s28, 4
          %s294 = smul.addr %s29, 4
          %s295 = sadd.s32 %s293, %s294
          %s296 = smul.addr %s295, 128
          %s297 = scalar_lea.hbm %s0, %s296
          %s298 = sshll.u32 %s289, 4
          %s299 = int_to_ptr.vmem [resolvable:$true] %s298
          %304 = dma.hbm_to_vmem [thread:$0]  %s297, 512, %s299, %s286, 128, 128, 8
        $region40: #{tpu_custom_call.1} parent=35 // pred_fallthru
          _
      $region36: #{tpu_custom_call.1} parent=5 // pred_fallthru
        _
      %p305 = scmp.le.s32.totalorder 1, %s21
      %p306 = scmp.lt.s32.totalorder %s21, 3
      %p307 = pnand %p305, %p306
      %p308 = pneg %p307
      // Predicated region
      $region41: #{tpu_custom_call.1} parent=5 // pred_check
        _
      $region42: #{tpu_custom_call.1} parent=5 // pred_check_branch
        %310 = sbr.rel (%p307) target = $region44
      $region43: #{tpu_custom_call.1} parent=5 // pred_region
        %s311 = ssub.s32 %s21, 1
        %s312 = sand.u32 %s48, 1
        %s313 = scalar_lea.sflag [#allocation7], %s312
        %s314 = sand.u32 %s48, 1
        %s315 = smul.addr %s314, 32
        %s316 = scalar_lea.vmem [#allocation6], %s315
        // Predicated region
        $region45: #{tpu_custom_call.1} parent=43 // pred_check
          %p317 = pneg %p61
        $region46: #{tpu_custom_call.1} parent=43 // pred_check_branch
          %319 = sbr.rel (%p317) target = $region48
        $region47: #{tpu_custom_call.1} parent=43 // pred_region
          %320 = dma.done %s313, 512
        $region48: #{tpu_custom_call.1} parent=43 // pred_fallthru
          _
        // Predicated region
        $region49: #{tpu_custom_call.1} parent=43 // pred_check
          %p321 = pneg %p82
        $region50: #{tpu_custom_call.1} parent=43 // pred_check_branch
          %323 = sbr.rel (%p321) target = $region52
        $region51: #{tpu_custom_call.1} parent=43 // pred_region
          %324 = dma.done [#allocation10], 2048
        $region52: #{tpu_custom_call.1} parent=43 // pred_fallthru
          _
        // Predicated region
        $region53: #{tpu_custom_call.1} parent=43 // pred_check
          %p325 = pneg %p103
        $region54: #{tpu_custom_call.1} parent=43 // pred_check_branch
          %327 = sbr.rel (%p325) target = $region56
        $region55: #{tpu_custom_call.1} parent=43 // pred_region
          %328 = dma.done [#allocation10], 8192
        $region56: #{tpu_custom_call.1} parent=43 // pred_fallthru
          _
        // Predicated region
        $region57: #{tpu_custom_call.1} parent=43 // pred_check
          %p329 = pneg %p145
        $region58: #{tpu_custom_call.1} parent=43 // pred_check_branch
          %331 = sbr.rel (%p329) target = $region60
        $region59: #{tpu_custom_call.1} parent=43 // pred_region
          %332 = dma.done [#allocation13], 2048
        $region60: #{tpu_custom_call.1} parent=43 // pred_fallthru
          _
        %s333 = sand.u32 %s48, 1
        %s334 = scalar_lea.sflag [#allocation7], %s333
        %s335 = sand.u32 %s48, 1
        %s336 = smul.addr %s335, 32
        %s337 = scalar_lea.vmem [#allocation6], %s336
        %p338 = pneg %p61
        %p339 = pneg %p58
        %p340 = pneg %p82
        %p341 = pneg %p79
        %p342 = pneg %p103
        %p343 = pneg %p100
        %p344 = pneg %p124
        %p345 = pneg %p121
        %p346 = pneg %p145
        %p347 = pneg %p142
        %p348 = pneg %p166
        %p349 = pneg %p163
        %p350 = pneg %p192
        %p351 = pneg %p189
        %p352 = pneg %p218
        %p353 = pneg %p215
        %p354 = scmp.eq.s32.totalorder %s31, 0
        // Predicated region
        $region61: #{tpu_custom_call.1} parent=43 // pred_check
          %p355 = pneg %p354
        $region62: #{tpu_custom_call.1} parent=43 // pred_check_branch
          %357 = sbr.rel (%p355) target = $region64
        $region63: #{tpu_custom_call.1} parent=43 // pred_region
          %358 = vst [vmem:[#allocation3] sm:$0xff] 0.0
          %359 = vst [vmem:[#allocation4] sm:$0xff] 0.0
          %360 = vst [vmem:[#allocation5] sm:$0xff] 0.0
        $region64: #{tpu_custom_call.1} parent=43 // pred_fallthru
          _
        %v361 = vld [vmem:[%s316] sm:$0xff]
        %v362 = vld [vmem:[#allocation9] sm:$0xff]
        %v363 = vld [vmem:[#allocation9 + $0x8] sm:$0xff]
        %v364 = vld [vmem:[#allocation9 + $0x10] sm:$0xff]
        %v365 = vld [vmem:[#allocation9 + $0x18] sm:$0xff]
        %v366 = vld [vmem:[#allocation9 + $0x20] sm:$0xff]
        %v367 = vld [vmem:[#allocation9 + $0x28] sm:$0xff]
        %v368 = vld [vmem:[#allocation9 + $0x30] sm:$0xff]
        %v369 = vld [vmem:[#allocation9 + $0x38] sm:$0xff]
        %v370 = vld [vmem:[#allocation9 + $0x40] sm:$0xff]
        %v371 = vld [vmem:[#allocation9 + $0x48] sm:$0xff]
        %v372 = vld [vmem:[#allocation9 + $0x50] sm:$0xff]
        %v373 = vld [vmem:[#allocation9 + $0x58] sm:$0xff]
        %v374 = vld [vmem:[#allocation9 + $0x60] sm:$0xff]
        %v375 = vld [vmem:[#allocation9 + $0x68] sm:$0xff]
        %v376 = vld [vmem:[#allocation9 + $0x70] sm:$0xff]
        %v377 = vld [vmem:[#allocation9 + $0x78] sm:$0xff]
        %v378 = vld [vmem:[%s3] sm:$0xf]
        %v380 = vlaneseq
        %v381 = vshrl.u32 %v380, 7
        %v382 = vsub.s32 0, %v381
        %v383 = vrot.slane %v378, %v382
        %v384 = vlaneseq
        %v385 = vshrl.u32 %v384, 7
        %v386 = vsub.s32 1, %v385
        %v387 = vrot.slane %v378, %v386
        %v388 = vlaneseq
        %v389 = vshrl.u32 %v388, 7
        %v390 = vsub.s32 2, %v389
        %v391 = vrot.slane %v378, %v390
        %v392 = vlaneseq
        %v393 = vshrl.u32 %v392, 7
        %v394 = vsub.s32 3, %v393
        %v395 = vrot.slane %v378, %v394
        %vm400 = vcmask 261120
        %v402 = vsel %vm400, %v361, 0
        %404 = vmatprep.subr.mxu0 0.0
        %405 = vmatpush1.msra.mxu0 0.0
        %406 = vmatprep.subr.mxu0 0.0
        %407 = vmatpush1.msra.mxu0 0.0
        %408 = vmatprep.subr.mxu0 0.0
        %409 = vmatpush1.msra.mxu0 0.0
        %410 = vmatprep.subr.mxu0 0.0
        %411 = vmatpush1.msra.mxu0 0.0
        %412 = vmatprep.subr.mxu0 0.0
        %413 = vmatpush1.msra.mxu0 0.0
        %414 = vmatprep.subr.mxu0 0.0
        %415 = vmatpush1.msra.mxu0 0.0
        %416 = vmatprep.subr.mxu0 0.0
        %417 = vmatpush1.msra.mxu0 0.0
        %418 = vmatprep.subr.mxu0 0.0
        %419 = vmatpush1.msra.mxu0 0.0
        %420 = vmatprep.subr.mxu0 0.0
        %421 = vmatpush1.msra.mxu0 0.0
        %422 = vmatprep.subr.mxu0 0.0
        %423 = vmatpush1.msra.mxu0 0.0
        %424 = vmatprep.subr.mxu0 0.0
        %425 = vmatpush1.msra.mxu0 0.0
        %426 = vmatprep.subr.mxu0 0.0
        %427 = vmatpush1.msra.mxu0 0.0
        %428 = vmatprep.subr.mxu0 %v375
        %429 = vmatpush1.msra.mxu0 %v374
        %430 = vmatprep.subr.mxu0 %v371
        %431 = vmatpush1.msra.mxu0 %v370
        %432 = vmatprep.subr.mxu0 %v367
        %433 = vmatpush1.msra.mxu0 %v366
        %434 = vmatprep.subr.mxu0 %v363
        %435 = vmatpush1.msra.mxu0 %v362
        %436 = vmatprep.subr.mxu0 0.0
        %437 = vmatpush2.msra.mxu0 0.0
        %438 = vmatprep.subr.mxu0 0.0
        %439 = vmatpush2.msra.mxu0 0.0
        %440 = vmatprep.subr.mxu0 0.0
        %441 = vmatpush2.msra.mxu0 0.0
        %442 = vmatprep.subr.mxu0 0.0
        %443 = vmatpush2.msra.mxu0 0.0
        %444 = vmatprep.subr.mxu0 0.0
        %445 = vmatpush2.msra.mxu0 0.0
        %446 = vmatprep.subr.mxu0 0.0
        %447 = vmatpush2.msra.mxu0 0.0
        %448 = vmatprep.subr.mxu0 0.0
        %449 = vmatpush2.msra.mxu0 0.0
        %450 = vmatprep.subr.mxu0 0.0
        %451 = vmatpush2.msra.mxu0 0.0
        %452 = vmatprep.subr.mxu0 0.0
        %453 = vmatpush2.msra.mxu0 0.0
        %454 = vmatprep.subr.mxu0 0.0
        %455 = vmatpush2.msra.mxu0 0.0
        %456 = vmatprep.subr.mxu0 0.0
        %457 = vmatpush2.msra.mxu0 0.0
        %458 = vmatprep.subr.mxu0 0.0
        %459 = vmatpush2.msra.mxu0 0.0
        %460 = vmatprep.subr.mxu0 0.0
        %461 = vmatpush2.msra.mxu0 0.0
        %462 = vmatprep.subr.mxu0 0.0
        %463 = vmatpush2.msra.mxu0 0.0
        %464 = vmatprep.subr.mxu0 0.0
        %465 = vmatpush2.msra.mxu0 0.0
        %466 = vmatprep.subr.mxu0 0.0
        %467 = vmatpush2.msra.mxu0 0.0
        %468 = vmatprep.mubr.f32.mxu0 0.0
        %469 = vmatmul.mubr.f32.gmra.mxu0 %v402
        %v470 = vpop.f32.mrf.mxu0
        %v471 = vadd.f32 %v383, %v470
        %v472 = vpop.f32.mrf.mxu0
        %v473 = vadd.f32 %v387, %v472
        %474 = vdwg.mxu0
        %475 = vmatprep.subr.mxu0 0.0
        %476 = vmatpush1.msra.mxu0 0.0
        %477 = vmatprep.subr.mxu0 0.0
        %478 = vmatpush1.msra.mxu0 0.0
        %479 = vmatprep.subr.mxu0 0.0
        %480 = vmatpush1.msra.mxu0 0.0
        %481 = vmatprep.subr.mxu0 0.0
        %482 = vmatpush1.msra.mxu0 0.0
        %483 = vmatprep.subr.mxu0 0.0
        %484 = vmatpush1.msra.mxu0 0.0
        %485 = vmatprep.subr.mxu0 0.0
        %486 = vmatpush1.msra.mxu0 0.0
        %487 = vmatprep.subr.mxu0 0.0
        %488 = vmatpush1.msra.mxu0 0.0
        %489 = vmatprep.subr.mxu0 0.0
        %490 = vmatpush1.msra.mxu0 0.0
        %491 = vmatprep.subr.mxu0 0.0
        %492 = vmatpush1.msra.mxu0 0.0
        %493 = vmatprep.subr.mxu0 0.0
        %494 = vmatpush1.msra.mxu0 0.0
        %495 = vmatprep.subr.mxu0 0.0
        %496 = vmatpush1.msra.mxu0 0.0
        %497 = vmatprep.subr.mxu0 0.0
        %498 = vmatpush1.msra.mxu0 0.0
        %499 = vmatprep.subr.mxu0 %v377
        %500 = vmatpush1.msra.mxu0 %v376
        %501 = vmatprep.subr.mxu0 %v373
        %502 = vmatpush1.msra.mxu0 %v372
        %503 = vmatprep.subr.mxu0 %v369
        %504 = vmatpush1.msra.mxu0 %v368
        %505 = vmatprep.subr.mxu0 %v365
        %506 = vmatpush1.msra.mxu0 %v364
        %507 = vmatprep.subr.mxu0 0.0
        %508 = vmatpush2.msra.mxu0 0.0
        %509 = vmatprep.subr.mxu0 0.0
        %510 = vmatpush2.msra.mxu0 0.0
        %511 = vmatprep.subr.mxu0 0.0
        %512 = vmatpush2.msra.mxu0 0.0
        %513 = vmatprep.subr.mxu0 0.0
        %514 = vmatpush2.msra.mxu0 0.0
        %515 = vmatprep.subr.mxu0 0.0
        %516 = vmatpush2.msra.mxu0 0.0
        %517 = vmatprep.subr.mxu0 0.0
        %518 = vmatpush2.msra.mxu0 0.0
        %519 = vmatprep.subr.mxu0 0.0
        %520 = vmatpush2.msra.mxu0 0.0
        %521 = vmatprep.subr.mxu0 0.0
        %522 = vmatpush2.msra.mxu0 0.0
        %523 = vmatprep.subr.mxu0 0.0
        %524 = vmatpush2.msra.mxu0 0.0
        %525 = vmatprep.subr.mxu0 0.0
        %526 = vmatpush2.msra.mxu0 0.0
        %527 = vmatprep.subr.mxu0 0.0
        %528 = vmatpush2.msra.mxu0 0.0
        %529 = vmatprep.subr.mxu0 0.0
        %530 = vmatpush2.msra.mxu0 0.0
        %531 = vmatprep.subr.mxu0 0.0
        %532 = vmatpush2.msra.mxu0 0.0
        %533 = vmatprep.subr.mxu0 0.0
        %534 = vmatpush2.msra.mxu0 0.0
        %535 = vmatprep.subr.mxu0 0.0
        %536 = vmatpush2.msra.mxu0 0.0
        %537 = vmatprep.subr.mxu0 0.0
        %538 = vmatpush2.msra.mxu0 0.0
        %539 = vmatprep.mubr.f32.mxu0 0.0
        %540 = vmatmul.mubr.f32.gmra.mxu0 %v402
        %v541 = vpop.f32.mrf.mxu0
        %v542 = vadd.f32 %v391, %v541
        %v543 = vpop.f32.mrf.mxu0
        %v544 = vadd.f32 %v395, %v543
        %545 = vdwg.mxu0
        %546 = vst [vmem:[#allocation2] sm:$0xff] %v471
        %547 = vst [vmem:[#allocation2 + $0x8] sm:$0xff] %v473
        %548 = vst [vmem:[#allocation2 + $0x10] sm:$0xff] %v542
        %549 = vst [vmem:[#allocation2 + $0x18] sm:$0xff] %v544
        %v550 = vld [vmem:[%s316 + $0x8] sm:$0xff]
        %v551 = vld [vmem:[#allocation9] sm:$0xff]
        %v552 = vld [vmem:[#allocation9 + $0x8] sm:$0xff]
        %v553 = vld [vmem:[#allocation9 + $0x10] sm:$0xff]
        %v554 = vld [vmem:[#allocation9 + $0x18] sm:$0xff]
        %v555 = vld [vmem:[#allocation9 + $0x20] sm:$0xff]
        %v556 = vld [vmem:[#allocation9 + $0x28] sm:$0xff]
        %v557 = vld [vmem:[#allocation9 + $0x30] sm:$0xff]
        %v558 = vld [vmem:[#allocation9 + $0x38] sm:$0xff]
        %v559 = vld [vmem:[#allocation9 + $0x40] sm:$0xff]
        %v560 = vld [vmem:[#allocation9 + $0x48] sm:$0xff]
        %v561 = vld [vmem:[#allocation9 + $0x50] sm:$0xff]
        %v562 = vld [vmem:[#allocation9 + $0x58] sm:$0xff]
        %v563 = vld [vmem:[#allocation9 + $0x60] sm:$0xff]
        %v564 = vld [vmem:[#allocation9 + $0x68] sm:$0xff]
        %v565 = vld [vmem:[#allocation9 + $0x70] sm:$0xff]
        %v566 = vld [vmem:[#allocation9 + $0x78] sm:$0xff]
        %v567 = vld [vmem:[%s3] sm:$0xf]
        %v569 = vlaneseq
        %v570 = vshrl.u32 %v569, 7
        %v571 = vsub.s32 0, %v570
        %v572 = vrot.slane %v567, %v571
        %v573 = vlaneseq
        %v574 = vshrl.u32 %v573, 7
        %v575 = vsub.s32 1, %v574
        %v576 = vrot.slane %v567, %v575
        %v577 = vlaneseq
        %v578 = vshrl.u32 %v577, 7
        %v579 = vsub.s32 2, %v578
        %v580 = vrot.slane %v567, %v579
        %v581 = vlaneseq
        %v582 = vshrl.u32 %v581, 7
        %v583 = vsub.s32 3, %v582
        %v584 = vrot.slane %v567, %v583
        %v590 = vsel %vm400, %v550, 0
        %592 = vmatprep.subr.mxu0 0.0
        %593 = vmatpush1.msra.mxu0 0.0
        %594 = vmatprep.subr.mxu0 0.0
        %595 = vmatpush1.msra.mxu0 0.0
        %596 = vmatprep.subr.mxu0 0.0
        %597 = vmatpush1.msra.mxu0 0.0
        %598 = vmatprep.subr.mxu0 0.0
        %599 = vmatpush1.msra.mxu0 0.0
        %600 = vmatprep.subr.mxu0 0.0
        %601 = vmatpush1.msra.mxu0 0.0
        %602 = vmatprep.subr.mxu0 0.0
        %603 = vmatpush1.msra.mxu0 0.0
        %604 = vmatprep.subr.mxu0 0.0
        %605 = vmatpush1.msra.mxu0 0.0
        %606 = vmatprep.subr.mxu0 0.0
        %607 = vmatpush1.msra.mxu0 0.0
        %608 = vmatprep.subr.mxu0 0.0
        %609 = vmatpush1.msra.mxu0 0.0
        %610 = vmatprep.subr.mxu0 0.0
        %611 = vmatpush1.msra.mxu0 0.0
        %612 = vmatprep.subr.mxu0 0.0
        %613 = vmatpush1.msra.mxu0 0.0
        %614 = vmatprep.subr.mxu0 0.0
        %615 = vmatpush1.msra.mxu0 0.0
        %616 = vmatprep.subr.mxu0 %v564
        %617 = vmatpush1.msra.mxu0 %v563
        %618 = vmatprep.subr.mxu0 %v560
        %619 = vmatpush1.msra.mxu0 %v559
        %620 = vmatprep.subr.mxu0 %v556
        %621 = vmatpush1.msra.mxu0 %v555
        %622 = vmatprep.subr.mxu0 %v552
        %623 = vmatpush1.msra.mxu0 %v551
        %624 = vmatprep.subr.mxu0 0.0
        %625 = vmatpush2.msra.mxu0 0.0
        %626 = vmatprep.subr.mxu0 0.0
        %627 = vmatpush2.msra.mxu0 0.0
        %628 = vmatprep.subr.mxu0 0.0
        %629 = vmatpush2.msra.mxu0 0.0
        %630 = vmatprep.subr.mxu0 0.0
        %631 = vmatpush2.msra.mxu0 0.0
        %632 = vmatprep.subr.mxu0 0.0
        %633 = vmatpush2.msra.mxu0 0.0
        %634 = vmatprep.subr.mxu0 0.0
        %635 = vmatpush2.msra.mxu0 0.0
        %636 = vmatprep.subr.mxu0 0.0
        %637 = vmatpush2.msra.mxu0 0.0
        %638 = vmatprep.subr.mxu0 0.0
        %639 = vmatpush2.msra.mxu0 0.0
        %640 = vmatprep.subr.mxu0 0.0
        %641 = vmatpush2.msra.mxu0 0.0
        %642 = vmatprep.subr.mxu0 0.0
        %643 = vmatpush2.msra.mxu0 0.0
        %644 = vmatprep.subr.mxu0 0.0
        %645 = vmatpush2.msra.mxu0 0.0
        %646 = vmatprep.subr.mxu0 0.0
        %647 = vmatpush2.msra.mxu0 0.0
        %648 = vmatprep.subr.mxu0 0.0
        %649 = vmatpush2.msra.mxu0 0.0
        %650 = vmatprep.subr.mxu0 0.0
        %651 = vmatpush2.msra.mxu0 0.0
        %652 = vmatprep.subr.mxu0 0.0
        %653 = vmatpush2.msra.mxu0 0.0
        %654 = vmatprep.subr.mxu0 0.0
        %655 = vmatpush2.msra.mxu0 0.0
        %656 = vmatprep.mubr.f32.mxu0 0.0
        %657 = vmatmul.mubr.f32.gmra.mxu0 %v590
        %v658 = vpop.f32.mrf.mxu0
        %v659 = vadd.f32 %v572, %v658
        %v660 = vpop.f32.mrf.mxu0
        %v661 = vadd.f32 %v576, %v660
        %662 = vdwg.mxu0
        %663 = vmatprep.subr.mxu0 0.0
        %664 = vmatpush1.msra.mxu0 0.0
        %665 = vmatprep.subr.mxu0 0.0
        %666 = vmatpush1.msra.mxu0 0.0
        %667 = vmatprep.subr.mxu0 0.0
        %668 = vmatpush1.msra.mxu0 0.0
        %669 = vmatprep.subr.mxu0 0.0
        %670 = vmatpush1.msra.mxu0 0.0
        %671 = vmatprep.subr.mxu0 0.0
        %672 = vmatpush1.msra.mxu0 0.0
        %673 = vmatprep.subr.mxu0 0.0
        %674 = vmatpush1.msra.mxu0 0.0
        %675 = vmatprep.subr.mxu0 0.0
        %676 = vmatpush1.msra.mxu0 0.0
        %677 = vmatprep.subr.mxu0 0.0
        %678 = vmatpush1.msra.mxu0 0.0
        %679 = vmatprep.subr.mxu0 0.0
        %680 = vmatpush1.msra.mxu0 0.0
        %681 = vmatprep.subr.mxu0 0.0
        %682 = vmatpush1.msra.mxu0 0.0
        %683 = vmatprep.subr.mxu0 0.0
        %684 = vmatpush1.msra.mxu0 0.0
        %685 = vmatprep.subr.mxu0 0.0
        %686 = vmatpush1.msra.mxu0 0.0
        %687 = vmatprep.subr.mxu0 %v566
        %688 = vmatpush1.msra.mxu0 %v565
        %689 = vmatprep.subr.mxu0 %v562
        %690 = vmatpush1.msra.mxu0 %v561
        %691 = vmatprep.subr.mxu0 %v558
        %692 = vmatpush1.msra.mxu0 %v557
        %693 = vmatprep.subr.mxu0 %v554
        %694 = vmatpush1.msra.mxu0 %v553
        %695 = vmatprep.subr.mxu0 0.0
        %696 = vmatpush2.msra.mxu0 0.0
        %697 = vmatprep.subr.mxu0 0.0
        %698 = vmatpush2.msra.mxu0 0.0
        %699 = vmatprep.subr.mxu0 0.0
        %700 = vmatpush2.msra.mxu0 0.0
        %701 = vmatprep.subr.mxu0 0.0
        %702 = vmatpush2.msra.mxu0 0.0
        %703 = vmatprep.subr.mxu0 0.0
        %704 = vmatpush2.msra.mxu0 0.0
        %705 = vmatprep.subr.mxu0 0.0
        %706 = vmatpush2.msra.mxu0 0.0
        %707 = vmatprep.subr.mxu0 0.0
        %708 = vmatpush2.msra.mxu0 0.0
        %709 = vmatprep.subr.mxu0 0.0
        %710 = vmatpush2.msra.mxu0 0.0
        %711 = vmatprep.subr.mxu0 0.0
        %712 = vmatpush2.msra.mxu0 0.0
        %713 = vmatprep.subr.mxu0 0.0
        %714 = vmatpush2.msra.mxu0 0.0
        %715 = vmatprep.subr.mxu0 0.0
        %716 = vmatpush2.msra.mxu0 0.0
        %717 = vmatprep.subr.mxu0 0.0
        %718 = vmatpush2.msra.mxu0 0.0
        %719 = vmatprep.subr.mxu0 0.0
        %720 = vmatpush2.msra.mxu0 0.0
        %721 = vmatprep.subr.mxu0 0.0
        %722 = vmatpush2.msra.mxu0 0.0
        %723 = vmatprep.subr.mxu0 0.0
        %724 = vmatpush2.msra.mxu0 0.0
        %725 = vmatprep.subr.mxu0 0.0
        %726 = vmatpush2.msra.mxu0 0.0
        %727 = vmatprep.mubr.f32.mxu0 0.0
        %728 = vmatmul.mubr.f32.gmra.mxu0 %v590
        %v729 = vpop.f32.mrf.mxu0
        %v730 = vadd.f32 %v580, %v729
        %v731 = vpop.f32.mrf.mxu0
        %v732 = vadd.f32 %v584, %v731
        %733 = vdwg.mxu0
        %734 = vst [vmem:[#allocation2 + $0x20] sm:$0xff] %v659
        %735 = vst [vmem:[#allocation2 + $0x28] sm:$0xff] %v661
        %736 = vst [vmem:[#allocation2 + $0x30] sm:$0xff] %v730
        %737 = vst [vmem:[#allocation2 + $0x38] sm:$0xff] %v732
        %v738 = vld [vmem:[%s316 + $0x10] sm:$0xff]
        %v739 = vld [vmem:[#allocation9] sm:$0xff]
        %v740 = vld [vmem:[#allocation9 + $0x8] sm:$0xff]
        %v741 = vld [vmem:[#allocation9 + $0x10] sm:$0xff]
        %v742 = vld [vmem:[#allocation9 + $0x18] sm:$0xff]
        %v743 = vld [vmem:[#allocation9 + $0x20] sm:$0xff]
        %v744 = vld [vmem:[#allocation9 + $0x28] sm:$0xff]
        %v745 = vld [vmem:[#allocation9 + $0x30] sm:$0xff]
        %v746 = vld [vmem:[#allocation9 + $0x38] sm:$0xff]
        %v747 = vld [vmem:[#allocation9 + $0x40] sm:$0xff]
        %v748 = vld [vmem:[#allocation9 + $0x48] sm:$0xff]
        %v749 = vld [vmem:[#allocation9 + $0x50] sm:$0xff]
        %v750 = vld [vmem:[#allocation9 + $0x58] sm:$0xff]
        %v751 = vld [vmem:[#allocation9 + $0x60] sm:$0xff]
        %v752 = vld [vmem:[#allocation9 + $0x68] sm:$0xff]
        %v753 = vld [vmem:[#allocation9 + $0x70] sm:$0xff]
        %v754 = vld [vmem:[#allocation9 + $0x78] sm:$0xff]
        %v755 = vld [vmem:[%s3] sm:$0xf]
        %v757 = vlaneseq
        %v758 = vshrl.u32 %v757, 7
        %v759 = vsub.s32 0, %v758
        %v760 = vrot.slane %v755, %v759
        %v761 = vlaneseq
        %v762 = vshrl.u32 %v761, 7
        %v763 = vsub.s32 1, %v762
        %v764 = vrot.slane %v755, %v763
        %v765 = vlaneseq
        %v766 = vshrl.u32 %v765, 7
        %v767 = vsub.s32 2, %v766
        %v768 = vrot.slane %v755, %v767
        %v769 = vlaneseq
        %v770 = vshrl.u32 %v769, 7
        %v771 = vsub.s32 3, %v770
        %v772 = vrot.slane %v755, %v771
        %v778 = vsel %vm400, %v738, 0
        %780 = vmatprep.subr.mxu0 0.0
        %781 = vmatpush1.msra.mxu0 0.0
        %782 = vmatprep.subr.mxu0 0.0
        %783 = vmatpush1.msra.mxu0 0.0
        %784 = vmatprep.subr.mxu0 0.0
        %785 = vmatpush1.msra.mxu0 0.0
        %786 = vmatprep.subr.mxu0 0.0
        %787 = vmatpush1.msra.mxu0 0.0
        %788 = vmatprep.subr.mxu0 0.0
        %789 = vmatpush1.msra.mxu0 0.0
        %790 = vmatprep.subr.mxu0 0.0
        %791 = vmatpush1.msra.mxu0 0.0
        %792 = vmatprep.subr.mxu0 0.0
        %793 = vmatpush1.msra.mxu0 0.0
        %794 = vmatprep.subr.mxu0 0.0
        %795 = vmatpush1.msra.mxu0 0.0
        %796 = vmatprep.subr.mxu0 0.0
        %797 = vmatpush1.msra.mxu0 0.0
        %798 = vmatprep.subr.mxu0 0.0
        %799 = vmatpush1.msra.mxu0 0.0
        %800 = vmatprep.subr.mxu0 0.0
        %801 = vmatpush1.msra.mxu0 0.0
        %802 = vmatprep.subr.mxu0 0.0
        %803 = vmatpush1.msra.mxu0 0.0
        %804 = vmatprep.subr.mxu0 %v752
        %805 = vmatpush1.msra.mxu0 %v751
        %806 = vmatprep.subr.mxu0 %v748
        %807 = vmatpush1.msra.mxu0 %v747
        %808 = vmatprep.subr.mxu0 %v744
        %809 = vmatpush1.msra.mxu0 %v743
        %810 = vmatprep.subr.mxu0 %v740
        %811 = vmatpush1.msra.mxu0 %v739
        %812 = vmatprep.subr.mxu0 0.0
        %813 = vmatpush2.msra.mxu0 0.0
        %814 = vmatprep.subr.mxu0 0.0
        %815 = vmatpush2.msra.mxu0 0.0
        %816 = vmatprep.subr.mxu0 0.0
        %817 = vmatpush2.msra.mxu0 0.0
        %818 = vmatprep.subr.mxu0 0.0
        %819 = vmatpush2.msra.mxu0 0.0
        %820 = vmatprep.subr.mxu0 0.0
        %821 = vmatpush2.msra.mxu0 0.0
        %822 = vmatprep.subr.mxu0 0.0
        %823 = vmatpush2.msra.mxu0 0.0
        %824 = vmatprep.subr.mxu0 0.0
        %825 = vmatpush2.msra.mxu0 0.0
        %826 = vmatprep.subr.mxu0 0.0
        %827 = vmatpush2.msra.mxu0 0.0
        %828 = vmatprep.subr.mxu0 0.0
        %829 = vmatpush2.msra.mxu0 0.0
        %830 = vmatprep.subr.mxu0 0.0
        %831 = vmatpush2.msra.mxu0 0.0
        %832 = vmatprep.subr.mxu0 0.0
        %833 = vmatpush2.msra.mxu0 0.0
        %834 = vmatprep.subr.mxu0 0.0
        %835 = vmatpush2.msra.mxu0 0.0
        %836 = vmatprep.subr.mxu0 0.0
        %837 = vmatpush2.msra.mxu0 0.0
        %838 = vmatprep.subr.mxu0 0.0
        %839 = vmatpush2.msra.mxu0 0.0
        %840 = vmatprep.subr.mxu0 0.0
        %841 = vmatpush2.msra.mxu0 0.0
        %842 = vmatprep.subr.mxu0 0.0
        %843 = vmatpush2.msra.mxu0 0.0
        %844 = vmatprep.mubr.f32.mxu0 0.0
        %845 = vmatmul.mubr.f32.gmra.mxu0 %v778
        %v846 = vpop.f32.mrf.mxu0
        %v847 = vadd.f32 %v760, %v846
        %v848 = vpop.f32.mrf.mxu0
        %v849 = vadd.f32 %v764, %v848
        %850 = vdwg.mxu0
        %851 = vmatprep.subr.mxu0 0.0
        %852 = vmatpush1.msra.mxu0 0.0
        %853 = vmatprep.subr.mxu0 0.0
        %854 = vmatpush1.msra.mxu0 0.0
        %855 = vmatprep.subr.mxu0 0.0
        %856 = vmatpush1.msra.mxu0 0.0
        %857 = vmatprep.subr.mxu0 0.0
        %858 = vmatpush1.msra.mxu0 0.0
        %859 = vmatprep.subr.mxu0 0.0
        %860 = vmatpush1.msra.mxu0 0.0
        %861 = vmatprep.subr.mxu0 0.0
        %862 = vmatpush1.msra.mxu0 0.0
        %863 = vmatprep.subr.mxu0 0.0
        %864 = vmatpush1.msra.mxu0 0.0
        %865 = vmatprep.subr.mxu0 0.0
        %866 = vmatpush1.msra.mxu0 0.0
        %867 = vmatprep.subr.mxu0 0.0
        %868 = vmatpush1.msra.mxu0 0.0
        %869 = vmatprep.subr.mxu0 0.0
        %870 = vmatpush1.msra.mxu0 0.0
        %871 = vmatprep.subr.mxu0 0.0
        %872 = vmatpush1.msra.mxu0 0.0
        %873 = vmatprep.subr.mxu0 0.0
        %874 = vmatpush1.msra.mxu0 0.0
        %875 = vmatprep.subr.mxu0 %v754
        %876 = vmatpush1.msra.mxu0 %v753
        %877 = vmatprep.subr.mxu0 %v750
        %878 = vmatpush1.msra.mxu0 %v749
        %879 = vmatprep.subr.mxu0 %v746
        %880 = vmatpush1.msra.mxu0 %v745
        %881 = vmatprep.subr.mxu0 %v742
        %882 = vmatpush1.msra.mxu0 %v741
        %883 = vmatprep.subr.mxu0 0.0
        %884 = vmatpush2.msra.mxu0 0.0
        %885 = vmatprep.subr.mxu0 0.0
        %886 = vmatpush2.msra.mxu0 0.0
        %887 = vmatprep.subr.mxu0 0.0
        %888 = vmatpush2.msra.mxu0 0.0
        %889 = vmatprep.subr.mxu0 0.0
        %890 = vmatpush2.msra.mxu0 0.0
        %891 = vmatprep.subr.mxu0 0.0
        %892 = vmatpush2.msra.mxu0 0.0
        %893 = vmatprep.subr.mxu0 0.0
        %894 = vmatpush2.msra.mxu0 0.0
        %895 = vmatprep.subr.mxu0 0.0
        %896 = vmatpush2.msra.mxu0 0.0
        %897 = vmatprep.subr.mxu0 0.0
        %898 = vmatpush2.msra.mxu0 0.0
        %899 = vmatprep.subr.mxu0 0.0
        %900 = vmatpush2.msra.mxu0 0.0
        %901 = vmatprep.subr.mxu0 0.0
        %902 = vmatpush2.msra.mxu0 0.0
        %903 = vmatprep.subr.mxu0 0.0
        %904 = vmatpush2.msra.mxu0 0.0
        %905 = vmatprep.subr.mxu0 0.0
        %906 = vmatpush2.msra.mxu0 0.0
        %907 = vmatprep.subr.mxu0 0.0
        %908 = vmatpush2.msra.mxu0 0.0
        %909 = vmatprep.subr.mxu0 0.0
        %910 = vmatpush2.msra.mxu0 0.0
        %911 = vmatprep.subr.mxu0 0.0
        %912 = vmatpush2.msra.mxu0 0.0
        %913 = vmatprep.subr.mxu0 0.0
        %914 = vmatpush2.msra.mxu0 0.0
        %915 = vmatprep.mubr.f32.mxu0 0.0
        %916 = vmatmul.mubr.f32.gmra.mxu0 %v778
        %v917 = vpop.f32.mrf.mxu0
        %v918 = vadd.f32 %v768, %v917
        %v919 = vpop.f32.mrf.mxu0
        %v920 = vadd.f32 %v772, %v919
        %921 = vdwg.mxu0
        %922 = vst [vmem:[#allocation2 + $0x40] sm:$0xff] %v847
        %923 = vst [vmem:[#allocation2 + $0x48] sm:$0xff] %v849
        %924 = vst [vmem:[#allocation2 + $0x50] sm:$0xff] %v918
        %925 = vst [vmem:[#allocation2 + $0x58] sm:$0xff] %v920
        %v926 = vld [vmem:[%s316 + $0x18] sm:$0xff]
        %v927 = vld [vmem:[#allocation9] sm:$0xff]
        %v928 = vld [vmem:[#allocation9 + $0x8] sm:$0xff]
        %v929 = vld [vmem:[#allocation9 + $0x10] sm:$0xff]
        %v930 = vld [vmem:[#allocation9 + $0x18] sm:$0xff]
        %v931 = vld [vmem:[#allocation9 + $0x20] sm:$0xff]
        %v932 = vld [vmem:[#allocation9 + $0x28] sm:$0xff]
        %v933 = vld [vmem:[#allocation9 + $0x30] sm:$0xff]
        %v934 = vld [vmem:[#allocation9 + $0x38] sm:$0xff]
        %v935 = vld [vmem:[#allocation9 + $0x40] sm:$0xff]
        %v936 = vld [vmem:[#allocation9 + $0x48] sm:$0xff]
        %v937 = vld [vmem:[#allocation9 + $0x50] sm:$0xff]
        %v938 = vld [vmem:[#allocation9 + $0x58] sm:$0xff]
        %v939 = vld [vmem:[#allocation9 + $0x60] sm:$0xff]
        %v940 = vld [vmem:[#allocation9 + $0x68] sm:$0xff]
        %v941 = vld [vmem:[#allocation9 + $0x70] sm:$0xff]
        %v942 = vld [vmem:[#allocation9 + $0x78] sm:$0xff]
        %v943 = vld [vmem:[%s3] sm:$0xf]
        %v945 = vlaneseq
        %v946 = vshrl.u32 %v945, 7
        %v947 = vsub.s32 0, %v946
        %v948 = vrot.slane %v943, %v947
        %v949 = vlaneseq
        %v950 = vshrl.u32 %v949, 7
        %v951 = vsub.s32 1, %v950
        %v952 = vrot.slane %v943, %v951
        %v953 = vlaneseq
        %v954 = vshrl.u32 %v953, 7
        %v955 = vsub.s32 2, %v954
        %v956 = vrot.slane %v943, %v955
        %v957 = vlaneseq
        %v958 = vshrl.u32 %v957, 7
        %v959 = vsub.s32 3, %v958
        %v960 = vrot.slane %v943, %v959
        %v966 = vsel %vm400, %v926, 0
        %968 = vmatprep.subr.mxu0 0.0
        %969 = vmatpush1.msra.mxu0 0.0
        %970 = vmatprep.subr.mxu0 0.0
        %971 = vmatpush1.msra.mxu0 0.0
        %972 = vmatprep.subr.mxu0 0.0
        %973 = vmatpush1.msra.mxu0 0.0
        %974 = vmatprep.subr.mxu0 0.0
        %975 = vmatpush1.msra.mxu0 0.0
        %976 = vmatprep.subr.mxu0 0.0
        %977 = vmatpush1.msra.mxu0 0.0
        %978 = vmatprep.subr.mxu0 0.0
        %979 = vmatpush1.msra.mxu0 0.0
        %980 = vmatprep.subr.mxu0 0.0
        %981 = vmatpush1.msra.mxu0 0.0
        %982 = vmatprep.subr.mxu0 0.0
        %983 = vmatpush1.msra.mxu0 0.0
        %984 = vmatprep.subr.mxu0 0.0
        %985 = vmatpush1.msra.mxu0 0.0
        %986 = vmatprep.subr.mxu0 0.0
        %987 = vmatpush1.msra.mxu0 0.0
        %988 = vmatprep.subr.mxu0 0.0
        %989 = vmatpush1.msra.mxu0 0.0
        %990 = vmatprep.subr.mxu0 0.0
        %991 = vmatpush1.msra.mxu0 0.0
        %992 = vmatprep.subr.mxu0 %v940
        %993 = vmatpush1.msra.mxu0 %v939
        %994 = vmatprep.subr.mxu0 %v936
        %995 = vmatpush1.msra.mxu0 %v935
        %996 = vmatprep.subr.mxu0 %v932
        %997 = vmatpush1.msra.mxu0 %v931
        %998 = vmatprep.subr.mxu0 %v928
        %999 = vmatpush1.msra.mxu0 %v927
        %1000 = vmatprep.subr.mxu0 0.0
        %1001 = vmatpush2.msra.mxu0 0.0
        %1002 = vmatprep.subr.mxu0 0.0
        %1003 = vmatpush2.msra.mxu0 0.0
        %1004 = vmatprep.subr.mxu0 0.0
        %1005 = vmatpush2.msra.mxu0 0.0
        %1006 = vmatprep.subr.mxu0 0.0
        %1007 = vmatpush2.msra.mxu0 0.0
        %1008 = vmatprep.subr.mxu0 0.0
        %1009 = vmatpush2.msra.mxu0 0.0
        %1010 = vmatprep.subr.mxu0 0.0
        %1011 = vmatpush2.msra.mxu0 0.0
        %1012 = vmatprep.subr.mxu0 0.0
        %1013 = vmatpush2.msra.mxu0 0.0
        %1014 = vmatprep.subr.mxu0 0.0
        %1015 = vmatpush2.msra.mxu0 0.0
        %1016 = vmatprep.subr.mxu0 0.0
        %1017 = vmatpush2.msra.mxu0 0.0
        %1018 = vmatprep.subr.mxu0 0.0
        %1019 = vmatpush2.msra.mxu0 0.0
        %1020 = vmatprep.subr.mxu0 0.0
        %1021 = vmatpush2.msra.mxu0 0.0
        %1022 = vmatprep.subr.mxu0 0.0
        %1023 = vmatpush2.msra.mxu0 0.0
        %1024 = vmatprep.subr.mxu0 0.0
        %1025 = vmatpush2.msra.mxu0 0.0
        %1026 = vmatprep.subr.mxu0 0.0
        %1027 = vmatpush2.msra.mxu0 0.0
        %1028 = vmatprep.subr.mxu0 0.0
        %1029 = vmatpush2.msra.mxu0 0.0
        %1030 = vmatprep.subr.mxu0 0.0
        %1031 = vmatpush2.msra.mxu0 0.0
        %1032 = vmatprep.mubr.f32.mxu0 0.0
        %1033 = vmatmul.mubr.f32.gmra.mxu0 %v966
        %v1034 = vpop.f32.mrf.mxu0
        %v1035 = vadd.f32 %v948, %v1034
        %v1036 = vpop.f32.mrf.mxu0
        %v1037 = vadd.f32 %v952, %v1036
        %1038 = vdwg.mxu0
        %1039 = vmatprep.subr.mxu0 0.0
        %1040 = vmatpush1.msra.mxu0 0.0
        %1041 = vmatprep.subr.mxu0 0.0
        %1042 = vmatpush1.msra.mxu0 0.0
        %1043 = vmatprep.subr.mxu0 0.0
        %1044 = vmatpush1.msra.mxu0 0.0
        %1045 = vmatprep.subr.mxu0 0.0
        %1046 = vmatpush1.msra.mxu0 0.0
        %1047 = vmatprep.subr.mxu0 0.0
        %1048 = vmatpush1.msra.mxu0 0.0
        %1049 = vmatprep.subr.mxu0 0.0
        %1050 = vmatpush1.msra.mxu0 0.0
        %1051 = vmatprep.subr.mxu0 0.0
        %1052 = vmatpush1.msra.mxu0 0.0
        %1053 = vmatprep.subr.mxu0 0.0
        %1054 = vmatpush1.msra.mxu0 0.0
        %1055 = vmatprep.subr.mxu0 0.0
        %1056 = vmatpush1.msra.mxu0 0.0
        %1057 = vmatprep.subr.mxu0 0.0
        %1058 = vmatpush1.msra.mxu0 0.0
        %1059 = vmatprep.subr.mxu0 0.0
        %1060 = vmatpush1.msra.mxu0 0.0
        %1061 = vmatprep.subr.mxu0 0.0
        %1062 = vmatpush1.msra.mxu0 0.0
        %1063 = vmatprep.subr.mxu0 %v942
        %1064 = vmatpush1.msra.mxu0 %v941
        %1065 = vmatprep.subr.mxu0 %v938
        %1066 = vmatpush1.msra.mxu0 %v937
        %1067 = vmatprep.subr.mxu0 %v934
        %1068 = vmatpush1.msra.mxu0 %v933
        %1069 = vmatprep.subr.mxu0 %v930
        %1070 = vmatpush1.msra.mxu0 %v929
        %1071 = vmatprep.subr.mxu0 0.0
        %1072 = vmatpush2.msra.mxu0 0.0
        %1073 = vmatprep.subr.mxu0 0.0
        %1074 = vmatpush2.msra.mxu0 0.0
        %1075 = vmatprep.subr.mxu0 0.0
        %1076 = vmatpush2.msra.mxu0 0.0
        %1077 = vmatprep.subr.mxu0 0.0
        %1078 = vmatpush2.msra.mxu0 0.0
        %1079 = vmatprep.subr.mxu0 0.0
        %1080 = vmatpush2.msra.mxu0 0.0
        %1081 = vmatprep.subr.mxu0 0.0
        %1082 = vmatpush2.msra.mxu0 0.0
        %1083 = vmatprep.subr.mxu0 0.0
        %1084 = vmatpush2.msra.mxu0 0.0
        %1085 = vmatprep.subr.mxu0 0.0
        %1086 = vmatpush2.msra.mxu0 0.0
        %1087 = vmatprep.subr.mxu0 0.0
        %1088 = vmatpush2.msra.mxu0 0.0
        %1089 = vmatprep.subr.mxu0 0.0
        %1090 = vmatpush2.msra.mxu0 0.0
        %1091 = vmatprep.subr.mxu0 0.0
        %1092 = vmatpush2.msra.mxu0 0.0
        %1093 = vmatprep.subr.mxu0 0.0
        %1094 = vmatpush2.msra.mxu0 0.0
        %1095 = vmatprep.subr.mxu0 0.0
        %1096 = vmatpush2.msra.mxu0 0.0
        %1097 = vmatprep.subr.mxu0 0.0
        %1098 = vmatpush2.msra.mxu0 0.0
        %1099 = vmatprep.subr.mxu0 0.0
        %1100 = vmatpush2.msra.mxu0 0.0
        %1101 = vmatprep.subr.mxu0 0.0
        %1102 = vmatpush2.msra.mxu0 0.0
        %1103 = vmatprep.mubr.f32.mxu0 0.0
        %1104 = vmatmul.mubr.f32.gmra.mxu0 %v966
        %v1105 = vpop.f32.mrf.mxu0
        %v1106 = vadd.f32 %v956, %v1105
        %v1107 = vpop.f32.mrf.mxu0
        %v1108 = vadd.f32 %v960, %v1107
        %1109 = vdwg.mxu0
        %1110 = vst [vmem:[#allocation2 + $0x60] sm:$0xff] %v1035
        %1111 = vst [vmem:[#allocation2 + $0x68] sm:$0xff] %v1037
        %1112 = vst [vmem:[#allocation2 + $0x70] sm:$0xff] %v1106
        %1113 = vst [vmem:[#allocation2 + $0x78] sm:$0xff] %v1108
        %v1114 = vld [vmem:[#allocation3] sm:$0xff]
        %v1115 = vld [vmem:[#allocation4] sm:$0xff]
        %v1116 = vld [vmem:[#allocation5] sm:$0xff]
        %s1117 = smul.u32 %s31, 4
        %p1118 = scmp.lt.s32.totalorder %s1117, 8
        %s1119 = scalar_select %p1118, 1, 0
        %s1120 = scvt.s32.f32 %s1119
        %v1121 = vld [vmem:[#allocation2] sm:$0xff]
        %v1122 = vld [vmem:[#allocation2 + $0x8] sm:$0xff]
        %v1123 = vld [vmem:[#allocation2 + $0x10] sm:$0xff]
        %v1124 = vld [vmem:[#allocation2 + $0x18] sm:$0xff]
        %v1125 = vld [vmem:[#allocation11] sm:$0xff]
        %v1126 = vld [vmem:[#allocation11 + $0x8] sm:$0xff]
        %v1127 = vld [vmem:[#allocation11 + $0x10] sm:$0xff]
        %v1128 = vld [vmem:[#allocation11 + $0x18] sm:$0xff]
        %v1129 = vld [vmem:[#allocation11 + $0x20] sm:$0xff]
        %v1130 = vld [vmem:[#allocation11 + $0x28] sm:$0xff]
        %v1131 = vld [vmem:[#allocation11 + $0x30] sm:$0xff]
        %v1132 = vld [vmem:[#allocation11 + $0x38] sm:$0xff]
        %v1133 = vld [vmem:[#allocation11 + $0x40] sm:$0xff]
        %v1134 = vld [vmem:[#allocation11 + $0x48] sm:$0xff]
        %v1135 = vld [vmem:[#allocation11 + $0x50] sm:$0xff]
        %v1136 = vld [vmem:[#allocation11 + $0x58] sm:$0xff]
        %v1137 = vld [vmem:[#allocation11 + $0x60] sm:$0xff]
        %v1138 = vld [vmem:[#allocation11 + $0x68] sm:$0xff]
        %v1139 = vld [vmem:[#allocation11 + $0x70] sm:$0xff]
        %v1140 = vld [vmem:[#allocation11 + $0x78] sm:$0xff]
        %v1141 = vld [vmem:[#allocation11 + $0x80] sm:$0xff]
        %v1142 = vld [vmem:[#allocation11 + $0x88] sm:$0xff]
        %v1143 = vld [vmem:[#allocation11 + $0x90] sm:$0xff]
        %v1144 = vld [vmem:[#allocation11 + $0x98] sm:$0xff]
        %v1145 = vld [vmem:[#allocation11 + $0xa0] sm:$0xff]
        %v1146 = vld [vmem:[#allocation11 + $0xa8] sm:$0xff]
        %v1147 = vld [vmem:[#allocation11 + $0xb0] sm:$0xff]
        %v1148 = vld [vmem:[#allocation11 + $0xb8] sm:$0xff]
        %v1149 = vld [vmem:[#allocation11 + $0xc0] sm:$0xff]
        %v1150 = vld [vmem:[#allocation11 + $0xc8] sm:$0xff]
        %v1151 = vld [vmem:[#allocation11 + $0xd0] sm:$0xff]
        %v1152 = vld [vmem:[#allocation11 + $0xd8] sm:$0xff]
        %v1153 = vld [vmem:[#allocation11 + $0xe0] sm:$0xff]
        %v1154 = vld [vmem:[#allocation11 + $0xe8] sm:$0xff]
        %v1155 = vld [vmem:[#allocation11 + $0xf0] sm:$0xff]
        %v1156 = vld [vmem:[#allocation11 + $0xf8] sm:$0xff]
        %v1157 = vld [vmem:[#allocation11 + $0x100] sm:$0xff]
        %v1158 = vld [vmem:[#allocation11 + $0x108] sm:$0xff]
        %v1159 = vld [vmem:[#allocation11 + $0x110] sm:$0xff]
        %v1160 = vld [vmem:[#allocation11 + $0x118] sm:$0xff]
        %v1161 = vld [vmem:[#allocation11 + $0x120] sm:$0xff]
        %v1162 = vld [vmem:[#allocation11 + $0x128] sm:$0xff]
        %v1163 = vld [vmem:[#allocation11 + $0x130] sm:$0xff]
        %v1164 = vld [vmem:[#allocation11 + $0x138] sm:$0xff]
        %v1165 = vld [vmem:[#allocation11 + $0x140] sm:$0xff]
        %v1166 = vld [vmem:[#allocation11 + $0x148] sm:$0xff]
        %v1167 = vld [vmem:[#allocation11 + $0x150] sm:$0xff]
        %v1168 = vld [vmem:[#allocation11 + $0x158] sm:$0xff]
        %v1169 = vld [vmem:[#allocation11 + $0x160] sm:$0xff]
        %v1170 = vld [vmem:[#allocation11 + $0x168] sm:$0xff]
        %v1171 = vld [vmem:[#allocation11 + $0x170] sm:$0xff]
        %v1172 = vld [vmem:[#allocation11 + $0x178] sm:$0xff]
        %v1173 = vld [vmem:[#allocation11 + $0x180] sm:$0xff]
        %v1174 = vld [vmem:[#allocation11 + $0x188] sm:$0xff]
        %v1175 = vld [vmem:[#allocation11 + $0x190] sm:$0xff]
        %v1176 = vld [vmem:[#allocation11 + $0x198] sm:$0xff]
        %v1177 = vld [vmem:[#allocation11 + $0x1a0] sm:$0xff]
        %v1178 = vld [vmem:[#allocation11 + $0x1a8] sm:$0xff]
        %v1179 = vld [vmem:[#allocation11 + $0x1b0] sm:$0xff]
        %v1180 = vld [vmem:[#allocation11 + $0x1b8] sm:$0xff]
        %v1181 = vld [vmem:[#allocation11 + $0x1c0] sm:$0xff]
        %v1182 = vld [vmem:[#allocation11 + $0x1c8] sm:$0xff]
        %v1183 = vld [vmem:[#allocation11 + $0x1d0] sm:$0xff]
        %v1184 = vld [vmem:[#allocation11 + $0x1d8] sm:$0xff]
        %v1185 = vld [vmem:[#allocation11 + $0x1e0] sm:$0xff]
        %v1186 = vld [vmem:[#allocation11 + $0x1e8] sm:$0xff]
        %v1187 = vld [vmem:[#allocation11 + $0x1f0] sm:$0xff]
        %v1188 = vld [vmem:[#allocation11 + $0x1f8] sm:$0xff]
        %1189 = vmatprep.subr.mxu0 %v1186
        %1190 = vmatpush1.msra.mxu0 %v1185
        %1191 = vmatprep.subr.mxu0 %v1182
        %1192 = vmatpush1.msra.mxu0 %v1181
        %1193 = vmatprep.subr.mxu0 %v1178
        %1194 = vmatpush1.msra.mxu0 %v1177
        %1195 = vmatprep.subr.mxu0 %v1174
        %1196 = vmatpush1.msra.mxu0 %v1173
        %1197 = vmatprep.subr.mxu0 %v1170
        %1198 = vmatpush1.msra.mxu0 %v1169
        %1199 = vmatprep.subr.mxu0 %v1166
        %1200 = vmatpush1.msra.mxu0 %v1165
        %1201 = vmatprep.subr.mxu0 %v1162
        %1202 = vmatpush1.msra.mxu0 %v1161
        %1203 = vmatprep.subr.mxu0 %v1158
        %1204 = vmatpush1.msra.mxu0 %v1157
        %1205 = vmatprep.subr.mxu0 %v1154
        %1206 = vmatpush1.msra.mxu0 %v1153
        %1207 = vmatprep.subr.mxu0 %v1150
        %1208 = vmatpush1.msra.mxu0 %v1149
        %1209 = vmatprep.subr.mxu0 %v1146
        %1210 = vmatpush1.msra.mxu0 %v1145
        %1211 = vmatprep.subr.mxu0 %v1142
        %1212 = vmatpush1.msra.mxu0 %v1141
        %1213 = vmatprep.subr.mxu0 %v1138
        %1214 = vmatpush1.msra.mxu0 %v1137
        %1215 = vmatprep.subr.mxu0 %v1134
        %1216 = vmatpush1.msra.mxu0 %v1133
        %1217 = vmatprep.subr.mxu0 %v1130
        %1218 = vmatpush1.msra.mxu0 %v1129
        %1219 = vmatprep.subr.mxu0 %v1126
        %1220 = vmatpush1.msra.mxu0 %v1125
        %1221 = vmatprep.subr.mxu0 0.0
        %1222 = vmatpush2.msra.mxu0 0.0
        %1223 = vmatprep.subr.mxu0 0.0
        %1224 = vmatpush2.msra.mxu0 0.0
        %1225 = vmatprep.subr.mxu0 0.0
        %1226 = vmatpush2.msra.mxu0 0.0
        %1227 = vmatprep.subr.mxu0 0.0
        %1228 = vmatpush2.msra.mxu0 0.0
        %1229 = vmatprep.subr.mxu0 0.0
        %1230 = vmatpush2.msra.mxu0 0.0
        %1231 = vmatprep.subr.mxu0 0.0
        %1232 = vmatpush2.msra.mxu0 0.0
        %1233 = vmatprep.subr.mxu0 0.0
        %1234 = vmatpush2.msra.mxu0 0.0
        %1235 = vmatprep.subr.mxu0 0.0
        %1236 = vmatpush2.msra.mxu0 0.0
        %1237 = vmatprep.subr.mxu0 0.0
        %1238 = vmatpush2.msra.mxu0 0.0
        %1239 = vmatprep.subr.mxu0 0.0
        %1240 = vmatpush2.msra.mxu0 0.0
        %1241 = vmatprep.subr.mxu0 0.0
        %1242 = vmatpush2.msra.mxu0 0.0
        %1243 = vmatprep.subr.mxu0 0.0
        %1244 = vmatpush2.msra.mxu0 0.0
        %1245 = vmatprep.subr.mxu0 0.0
        %1246 = vmatpush2.msra.mxu0 0.0
        %1247 = vmatprep.subr.mxu0 0.0
        %1248 = vmatpush2.msra.mxu0 0.0
        %1249 = vmatprep.subr.mxu0 0.0
        %1250 = vmatpush2.msra.mxu0 0.0
        %1251 = vmatprep.subr.mxu0 0.0
        %1252 = vmatpush2.msra.mxu0 0.0
        %1253 = vmatprep.mubr.f32.mxu0 0.0
        %1254 = vmatmul.mubr.f32.gmra.mxu0 %v1114
        %v1255 = vpop.f32.mrf.mxu0
        %v1256 = vadd.f32 0.0, %v1255
        %v1257 = vpop.f32.mrf.mxu0
        %v1258 = vadd.f32 0.0, %v1257
        %1259 = vdwg.mxu0
        %1260 = vmatprep.subr.mxu0 %v1188
        %1261 = vmatpush1.msra.mxu0 %v1187
        %1262 = vmatprep.subr.mxu0 %v1184
        %1263 = vmatpush1.msra.mxu0 %v1183
        %1264 = vmatprep.subr.mxu0 %v1180
        %1265 = vmatpush1.msra.mxu0 %v1179
        %1266 = vmatprep.subr.mxu0 %v1176
        %1267 = vmatpush1.msra.mxu0 %v1175
        %1268 = vmatprep.subr.mxu0 %v1172
        %1269 = vmatpush1.msra.mxu0 %v1171
        %1270 = vmatprep.subr.mxu0 %v1168
        %1271 = vmatpush1.msra.mxu0 %v1167
        %1272 = vmatprep.subr.mxu0 %v1164
        %1273 = vmatpush1.msra.mxu0 %v1163
        %1274 = vmatprep.subr.mxu0 %v1160
        %1275 = vmatpush1.msra.mxu0 %v1159
        %1276 = vmatprep.subr.mxu0 %v1156
        %1277 = vmatpush1.msra.mxu0 %v1155
        %1278 = vmatprep.subr.mxu0 %v1152
        %1279 = vmatpush1.msra.mxu0 %v1151
        %1280 = vmatprep.subr.mxu0 %v1148
        %1281 = vmatpush1.msra.mxu0 %v1147
        %1282 = vmatprep.subr.mxu0 %v1144
        %1283 = vmatpush1.msra.mxu0 %v1143
        %1284 = vmatprep.subr.mxu0 %v1140
        %1285 = vmatpush1.msra.mxu0 %v1139
        %1286 = vmatprep.subr.mxu0 %v1136
        %1287 = vmatpush1.msra.mxu0 %v1135
        %1288 = vmatprep.subr.mxu0 %v1132
        %1289 = vmatpush1.msra.mxu0 %v1131
        %1290 = vmatprep.subr.mxu0 %v1128
        %1291 = vmatpush1.msra.mxu0 %v1127
        %1292 = vmatprep.subr.mxu0 0.0
        %1293 = vmatpush2.msra.mxu0 0.0
        %1294 = vmatprep.subr.mxu0 0.0
        %1295 = vmatpush2.msra.mxu0 0.0
        %1296 = vmatprep.subr.mxu0 0.0
        %1297 = vmatpush2.msra.mxu0 0.0
        %1298 = vmatprep.subr.mxu0 0.0
        %1299 = vmatpush2.msra.mxu0 0.0
        %1300 = vmatprep.subr.mxu0 0.0
        %1301 = vmatpush2.msra.mxu0 0.0
        %1302 = vmatprep.subr.mxu0 0.0
        %1303 = vmatpush2.msra.mxu0 0.0
        %1304 = vmatprep.subr.mxu0 0.0
        %1305 = vmatpush2.msra.mxu0 0.0
        %1306 = vmatprep.subr.mxu0 0.0
        %1307 = vmatpush2.msra.mxu0 0.0
        %1308 = vmatprep.subr.mxu0 0.0
        %1309 = vmatpush2.msra.mxu0 0.0
        %1310 = vmatprep.subr.mxu0 0.0
        %1311 = vmatpush2.msra.mxu0 0.0
        %1312 = vmatprep.subr.mxu0 0.0
        %1313 = vmatpush2.msra.mxu0 0.0
        %1314 = vmatprep.subr.mxu0 0.0
        %1315 = vmatpush2.msra.mxu0 0.0
        %1316 = vmatprep.subr.mxu0 0.0
        %1317 = vmatpush2.msra.mxu0 0.0
        %1318 = vmatprep.subr.mxu0 0.0
        %1319 = vmatpush2.msra.mxu0 0.0
        %1320 = vmatprep.subr.mxu0 0.0
        %1321 = vmatpush2.msra.mxu0 0.0
        %1322 = vmatprep.subr.mxu0 0.0
        %1323 = vmatpush2.msra.mxu0 0.0
        %1324 = vmatprep.mubr.f32.mxu0 0.0
        %1325 = vmatmul.mubr.f32.gmra.mxu0 %v1114
        %v1326 = vpop.f32.mrf.mxu0
        %v1327 = vadd.f32 0.0, %v1326
        %v1328 = vpop.f32.mrf.mxu0
        %v1329 = vadd.f32 0.0, %v1328
        %1330 = vdwg.mxu0
        %v1331 = vadd.f32 %v1121, %v1256
        %v1332 = vadd.f32 %v1122, %v1258
        %v1333 = vadd.f32 %v1123, %v1327
        %v1334 = vadd.f32 %v1124, %v1329
        %v1335 = vxor.u32 %v1331, 2147483648
        %v1336 = vmul.f32 %v1335, 1.442695
        %v1337 = vpow.pop %v1336
        %v1338 = vadd.f32 %v1337, 1.0
        %v1339 = vrcp.pop %v1338
        %v1340 = vmul.f32 1.0, %v1339
        %v1341 = vxor.u32 %v1332, 2147483648
        %v1342 = vmul.f32 %v1341, 1.442695
        %v1343 = vpow.pop %v1342
        %v1344 = vadd.f32 %v1343, 1.0
        %v1345 = vrcp.pop %v1344
        %v1346 = vmul.f32 1.0, %v1345
        %v1347 = vtanh.pop %v1333
        %v1348 = vxor.u32 %v1334, 2147483648
        %v1349 = vmul.f32 %v1348, 1.442695
        %v1350 = vpow.pop %v1349
        %v1351 = vadd.f32 %v1350, 1.0
        %v1352 = vrcp.pop %v1351
        %v1353 = vmul.f32 1.0, %v1352
        %v1354 = vmul.f32 %v1346, %v1115
        %v1355 = vmul.f32 %v1340, %v1347
        %v1356 = vadd.f32 %v1354, %v1355
        %v1357 = vtanh.pop %v1356
        %v1358 = vmul.f32 %v1353, %v1357
        %v1359 = vsub.f32 %v1356, %v1115
        %v1360 = vstv %s1120
        %v1361 = vmul.f32 %v1360, %v1359
        %v1362 = vadd.f32 %v1115, %v1361
        %v1363 = vsub.f32 %v1358, %v1114
        %v1364 = vmul.f32 %v1360, %v1363
        %v1365 = vadd.f32 %v1114, %v1364
        %v1366 = vmul.f32 %v1360, %v1358
        %v1367 = vadd.f32 %v1116, %v1366
        %s1368 = sadd.s32 %s1117, 1
        %p1369 = scmp.lt.s32.totalorder %s1368, 8
        %s1370 = scalar_select %p1369, 1, 0
        %s1371 = scvt.s32.f32 %s1370
        %v1372 = vld [vmem:[#allocation2 + $0x20] sm:$0xff]
        %v1373 = vld [vmem:[#allocation2 + $0x28] sm:$0xff]
        %v1374 = vld [vmem:[#allocation2 + $0x30] sm:$0xff]
        %v1375 = vld [vmem:[#allocation2 + $0x38] sm:$0xff]
        %1376 = vmatprep.subr.mxu0 %v1186
        %1377 = vmatpush1.msra.mxu0 %v1185
        %1378 = vmatprep.subr.mxu0 %v1182
        %1379 = vmatpush1.msra.mxu0 %v1181
        %1380 = vmatprep.subr.mxu0 %v1178
        %1381 = vmatpush1.msra.mxu0 %v1177
        %1382 = vmatprep.subr.mxu0 %v1174
        %1383 = vmatpush1.msra.mxu0 %v1173
        %1384 = vmatprep.subr.mxu0 %v1170
        %1385 = vmatpush1.msra.mxu0 %v1169
        %1386 = vmatprep.subr.mxu0 %v1166
        %1387 = vmatpush1.msra.mxu0 %v1165
        %1388 = vmatprep.subr.mxu0 %v1162
        %1389 = vmatpush1.msra.mxu0 %v1161
        %1390 = vmatprep.subr.mxu0 %v1158
        %1391 = vmatpush1.msra.mxu0 %v1157
        %1392 = vmatprep.subr.mxu0 %v1154
        %1393 = vmatpush1.msra.mxu0 %v1153
        %1394 = vmatprep.subr.mxu0 %v1150
        %1395 = vmatpush1.msra.mxu0 %v1149
        %1396 = vmatprep.subr.mxu0 %v1146
        %1397 = vmatpush1.msra.mxu0 %v1145
        %1398 = vmatprep.subr.mxu0 %v1142
        %1399 = vmatpush1.msra.mxu0 %v1141
        %1400 = vmatprep.subr.mxu0 %v1138
        %1401 = vmatpush1.msra.mxu0 %v1137
        %1402 = vmatprep.subr.mxu0 %v1134
        %1403 = vmatpush1.msra.mxu0 %v1133
        %1404 = vmatprep.subr.mxu0 %v1130
        %1405 = vmatpush1.msra.mxu0 %v1129
        %1406 = vmatprep.subr.mxu0 %v1126
        %1407 = vmatpush1.msra.mxu0 %v1125
        %1408 = vmatprep.subr.mxu0 0.0
        %1409 = vmatpush2.msra.mxu0 0.0
        %1410 = vmatprep.subr.mxu0 0.0
        %1411 = vmatpush2.msra.mxu0 0.0
        %1412 = vmatprep.subr.mxu0 0.0
        %1413 = vmatpush2.msra.mxu0 0.0
        %1414 = vmatprep.subr.mxu0 0.0
        %1415 = vmatpush2.msra.mxu0 0.0
        %1416 = vmatprep.subr.mxu0 0.0
        %1417 = vmatpush2.msra.mxu0 0.0
        %1418 = vmatprep.subr.mxu0 0.0
        %1419 = vmatpush2.msra.mxu0 0.0
        %1420 = vmatprep.subr.mxu0 0.0
        %1421 = vmatpush2.msra.mxu0 0.0
        %1422 = vmatprep.subr.mxu0 0.0
        %1423 = vmatpush2.msra.mxu0 0.0
        %1424 = vmatprep.subr.mxu0 0.0
        %1425 = vmatpush2.msra.mxu0 0.0
        %1426 = vmatprep.subr.mxu0 0.0
        %1427 = vmatpush2.msra.mxu0 0.0
        %1428 = vmatprep.subr.mxu0 0.0
        %1429 = vmatpush2.msra.mxu0 0.0
        %1430 = vmatprep.subr.mxu0 0.0
        %1431 = vmatpush2.msra.mxu0 0.0
        %1432 = vmatprep.subr.mxu0 0.0
        %1433 = vmatpush2.msra.mxu0 0.0
        %1434 = vmatprep.subr.mxu0 0.0
        %1435 = vmatpush2.msra.mxu0 0.0
        %1436 = vmatprep.subr.mxu0 0.0
        %1437 = vmatpush2.msra.mxu0 0.0
        %1438 = vmatprep.subr.mxu0 0.0
        %1439 = vmatpush2.msra.mxu0 0.0
        %1440 = vmatprep.mubr.f32.mxu0 0.0
        %1441 = vmatmul.mubr.f32.gmra.mxu0 %v1365
        %v1442 = vpop.f32.mrf.mxu0
        %v1443 = vadd.f32 0.0, %v1442
        %v1444 = vpop.f32.mrf.mxu0
        %v1445 = vadd.f32 0.0, %v1444
        %1446 = vdwg.mxu0
        %1447 = vmatprep.subr.mxu0 %v1188
        %1448 = vmatpush1.msra.mxu0 %v1187
        %1449 = vmatprep.subr.mxu0 %v1184
        %1450 = vmatpush1.msra.mxu0 %v1183
        %1451 = vmatprep.subr.mxu0 %v1180
        %1452 = vmatpush1.msra.mxu0 %v1179
        %1453 = vmatprep.subr.mxu0 %v1176
        %1454 = vmatpush1.msra.mxu0 %v1175
        %1455 = vmatprep.subr.mxu0 %v1172
        %1456 = vmatpush1.msra.mxu0 %v1171
        %1457 = vmatprep.subr.mxu0 %v1168
        %1458 = vmatpush1.msra.mxu0 %v1167
        %1459 = vmatprep.subr.mxu0 %v1164
        %1460 = vmatpush1.msra.mxu0 %v1163
        %1461 = vmatprep.subr.mxu0 %v1160
        %1462 = vmatpush1.msra.mxu0 %v1159
        %1463 = vmatprep.subr.mxu0 %v1156
        %1464 = vmatpush1.msra.mxu0 %v1155
        %1465 = vmatprep.subr.mxu0 %v1152
        %1466 = vmatpush1.msra.mxu0 %v1151
        %1467 = vmatprep.subr.mxu0 %v1148
        %1468 = vmatpush1.msra.mxu0 %v1147
        %1469 = vmatprep.subr.mxu0 %v1144
        %1470 = vmatpush1.msra.mxu0 %v1143
        %1471 = vmatprep.subr.mxu0 %v1140
        %1472 = vmatpush1.msra.mxu0 %v1139
        %1473 = vmatprep.subr.mxu0 %v1136
        %1474 = vmatpush1.msra.mxu0 %v1135
        %1475 = vmatprep.subr.mxu0 %v1132
        %1476 = vmatpush1.msra.mxu0 %v1131
        %1477 = vmatprep.subr.mxu0 %v1128
        %1478 = vmatpush1.msra.mxu0 %v1127
        %1479 = vmatprep.subr.mxu0 0.0
        %1480 = vmatpush2.msra.mxu0 0.0
        %1481 = vmatprep.subr.mxu0 0.0
        %1482 = vmatpush2.msra.mxu0 0.0
        %1483 = vmatprep.subr.mxu0 0.0
        %1484 = vmatpush2.msra.mxu0 0.0
        %1485 = vmatprep.subr.mxu0 0.0
        %1486 = vmatpush2.msra.mxu0 0.0
        %1487 = vmatprep.subr.mxu0 0.0
        %1488 = vmatpush2.msra.mxu0 0.0
        %1489 = vmatprep.subr.mxu0 0.0
        %1490 = vmatpush2.msra.mxu0 0.0
        %1491 = vmatprep.subr.mxu0 0.0
        %1492 = vmatpush2.msra.mxu0 0.0
        %1493 = vmatprep.subr.mxu0 0.0
        %1494 = vmatpush2.msra.mxu0 0.0
        %1495 = vmatprep.subr.mxu0 0.0
        %1496 = vmatpush2.msra.mxu0 0.0
        %1497 = vmatprep.subr.mxu0 0.0
        %1498 = vmatpush2.msra.mxu0 0.0
        %1499 = vmatprep.subr.mxu0 0.0
        %1500 = vmatpush2.msra.mxu0 0.0
        %1501 = vmatprep.subr.mxu0 0.0
        %1502 = vmatpush2.msra.mxu0 0.0
        %1503 = vmatprep.subr.mxu0 0.0
        %1504 = vmatpush2.msra.mxu0 0.0
        %1505 = vmatprep.subr.mxu0 0.0
        %1506 = vmatpush2.msra.mxu0 0.0
        %1507 = vmatprep.subr.mxu0 0.0
        %1508 = vmatpush2.msra.mxu0 0.0
        %1509 = vmatprep.subr.mxu0 0.0
        %1510 = vmatpush2.msra.mxu0 0.0
        %1511 = vmatprep.mubr.f32.mxu0 0.0
        %1512 = vmatmul.mubr.f32.gmra.mxu0 %v1365
        %v1513 = vpop.f32.mrf.mxu0
        %v1514 = vadd.f32 0.0, %v1513
        %v1515 = vpop.f32.mrf.mxu0
        %v1516 = vadd.f32 0.0, %v1515
        %1517 = vdwg.mxu0
        %v1518 = vadd.f32 %v1372, %v1443
        %v1519 = vadd.f32 %v1373, %v1445
        %v1520 = vadd.f32 %v1374, %v1514
        %v1521 = vadd.f32 %v1375, %v1516
        %v1522 = vxor.u32 %v1518, 2147483648
        %v1523 = vmul.f32 %v1522, 1.442695
        %v1524 = vpow.pop %v1523
        %v1525 = vadd.f32 %v1524, 1.0
        %v1526 = vrcp.pop %v1525
        %v1527 = vmul.f32 1.0, %v1526
        %v1528 = vxor.u32 %v1519, 2147483648
        %v1529 = vmul.f32 %v1528, 1.442695
        %v1530 = vpow.pop %v1529
        %v1531 = vadd.f32 %v1530, 1.0
        %v1532 = vrcp.pop %v1531
        %v1533 = vmul.f32 1.0, %v1532
        %v1534 = vtanh.pop %v1520
        %v1535 = vxor.u32 %v1521, 2147483648
        %v1536 = vmul.f32 %v1535, 1.442695
        %v1537 = vpow.pop %v1536
        %v1538 = vadd.f32 %v1537, 1.0
        %v1539 = vrcp.pop %v1538
        %v1540 = vmul.f32 1.0, %v1539
        %v1541 = vmul.f32 %v1533, %v1362
        %v1542 = vmul.f32 %v1527, %v1534
        %v1543 = vadd.f32 %v1541, %v1542
        %v1544 = vtanh.pop %v1543
        %v1545 = vmul.f32 %v1540, %v1544
        %v1546 = vsub.f32 %v1543, %v1362
        %v1547 = vstv %s1371
        %v1548 = vmul.f32 %v1547, %v1546
        %v1549 = vadd.f32 %v1362, %v1548
        %v1550 = vsub.f32 %v1545, %v1365
        %v1551 = vmul.f32 %v1547, %v1550
        %v1552 = vadd.f32 %v1365, %v1551
        %v1553 = vmul.f32 %v1547, %v1545
        %v1554 = vadd.f32 %v1367, %v1553
        %s1555 = sadd.s32 %s1117, 2
        %p1556 = scmp.lt.s32.totalorder %s1555, 8
        %s1557 = scalar_select %p1556, 1, 0
        %s1558 = scvt.s32.f32 %s1557
        %v1559 = vld [vmem:[#allocation2 + $0x40] sm:$0xff]
        %v1560 = vld [vmem:[#allocation2 + $0x48] sm:$0xff]
        %v1561 = vld [vmem:[#allocation2 + $0x50] sm:$0xff]
        %v1562 = vld [vmem:[#allocation2 + $0x58] sm:$0xff]
        %1563 = vmatprep.subr.mxu0 %v1186
        %1564 = vmatpush1.msra.mxu0 %v1185
        %1565 = vmatprep.subr.mxu0 %v1182
        %1566 = vmatpush1.msra.mxu0 %v1181
        %1567 = vmatprep.subr.mxu0 %v1178
        %1568 = vmatpush1.msra.mxu0 %v1177
        %1569 = vmatprep.subr.mxu0 %v1174
        %1570 = vmatpush1.msra.mxu0 %v1173
        %1571 = vmatprep.subr.mxu0 %v1170
        %1572 = vmatpush1.msra.mxu0 %v1169
        %1573 = vmatprep.subr.mxu0 %v1166
        %1574 = vmatpush1.msra.mxu0 %v1165
        %1575 = vmatprep.subr.mxu0 %v1162
        %1576 = vmatpush1.msra.mxu0 %v1161
        %1577 = vmatprep.subr.mxu0 %v1158
        %1578 = vmatpush1.msra.mxu0 %v1157
        %1579 = vmatprep.subr.mxu0 %v1154
        %1580 = vmatpush1.msra.mxu0 %v1153
        %1581 = vmatprep.subr.mxu0 %v1150
        %1582 = vmatpush1.msra.mxu0 %v1149
        %1583 = vmatprep.subr.mxu0 %v1146
        %1584 = vmatpush1.msra.mxu0 %v1145
        %1585 = vmatprep.subr.mxu0 %v1142
        %1586 = vmatpush1.msra.mxu0 %v1141
        %1587 = vmatprep.subr.mxu0 %v1138
        %1588 = vmatpush1.msra.mxu0 %v1137
        %1589 = vmatprep.subr.mxu0 %v1134
        %1590 = vmatpush1.msra.mxu0 %v1133
        %1591 = vmatprep.subr.mxu0 %v1130
        %1592 = vmatpush1.msra.mxu0 %v1129
        %1593 = vmatprep.subr.mxu0 %v1126
        %1594 = vmatpush1.msra.mxu0 %v1125
        %1595 = vmatprep.subr.mxu0 0.0
        %1596 = vmatpush2.msra.mxu0 0.0
        %1597 = vmatprep.subr.mxu0 0.0
        %1598 = vmatpush2.msra.mxu0 0.0
        %1599 = vmatprep.subr.mxu0 0.0
        %1600 = vmatpush2.msra.mxu0 0.0
        %1601 = vmatprep.subr.mxu0 0.0
        %1602 = vmatpush2.msra.mxu0 0.0
        %1603 = vmatprep.subr.mxu0 0.0
        %1604 = vmatpush2.msra.mxu0 0.0
        %1605 = vmatprep.subr.mxu0 0.0
        %1606 = vmatpush2.msra.mxu0 0.0
        %1607 = vmatprep.subr.mxu0 0.0
        %1608 = vmatpush2.msra.mxu0 0.0
        %1609 = vmatprep.subr.mxu0 0.0
        %1610 = vmatpush2.msra.mxu0 0.0
        %1611 = vmatprep.subr.mxu0 0.0
        %1612 = vmatpush2.msra.mxu0 0.0
        %1613 = vmatprep.subr.mxu0 0.0
        %1614 = vmatpush2.msra.mxu0 0.0
        %1615 = vmatprep.subr.mxu0 0.0
        %1616 = vmatpush2.msra.mxu0 0.0
        %1617 = vmatprep.subr.mxu0 0.0
        %1618 = vmatpush2.msra.mxu0 0.0
        %1619 = vmatprep.subr.mxu0 0.0
        %1620 = vmatpush2.msra.mxu0 0.0
        %1621 = vmatprep.subr.mxu0 0.0
        %1622 = vmatpush2.msra.mxu0 0.0
        %1623 = vmatprep.subr.mxu0 0.0
        %1624 = vmatpush2.msra.mxu0 0.0
        %1625 = vmatprep.subr.mxu0 0.0
        %1626 = vmatpush2.msra.mxu0 0.0
        %1627 = vmatprep.mubr.f32.mxu0 0.0
        %1628 = vmatmul.mubr.f32.gmra.mxu0 %v1552
        %v1629 = vpop.f32.mrf.mxu0
        %v1630 = vadd.f32 0.0, %v1629
        %v1631 = vpop.f32.mrf.mxu0
        %v1632 = vadd.f32 0.0, %v1631
        %1633 = vdwg.mxu0
        %1634 = vmatprep.subr.mxu0 %v1188
        %1635 = vmatpush1.msra.mxu0 %v1187
        %1636 = vmatprep.subr.mxu0 %v1184
        %1637 = vmatpush1.msra.mxu0 %v1183
        %1638 = vmatprep.subr.mxu0 %v1180
        %1639 = vmatpush1.msra.mxu0 %v1179
        %1640 = vmatprep.subr.mxu0 %v1176
        %1641 = vmatpush1.msra.mxu0 %v1175
        %1642 = vmatprep.subr.mxu0 %v1172
        %1643 = vmatpush1.msra.mxu0 %v1171
        %1644 = vmatprep.subr.mxu0 %v1168
        %1645 = vmatpush1.msra.mxu0 %v1167
        %1646 = vmatprep.subr.mxu0 %v1164
        %1647 = vmatpush1.msra.mxu0 %v1163
        %1648 = vmatprep.subr.mxu0 %v1160
        %1649 = vmatpush1.msra.mxu0 %v1159
        %1650 = vmatprep.subr.mxu0 %v1156
        %1651 = vmatpush1.msra.mxu0 %v1155
        %1652 = vmatprep.subr.mxu0 %v1152
        %1653 = vmatpush1.msra.mxu0 %v1151
        %1654 = vmatprep.subr.mxu0 %v1148
        %1655 = vmatpush1.msra.mxu0 %v1147
        %1656 = vmatprep.subr.mxu0 %v1144
        %1657 = vmatpush1.msra.mxu0 %v1143
        %1658 = vmatprep.subr.mxu0 %v1140
        %1659 = vmatpush1.msra.mxu0 %v1139
        %1660 = vmatprep.subr.mxu0 %v1136
        %1661 = vmatpush1.msra.mxu0 %v1135
        %1662 = vmatprep.subr.mxu0 %v1132
        %1663 = vmatpush1.msra.mxu0 %v1131
        %1664 = vmatprep.subr.mxu0 %v1128
        %1665 = vmatpush1.msra.mxu0 %v1127
        %1666 = vmatprep.subr.mxu0 0.0
        %1667 = vmatpush2.msra.mxu0 0.0
        %1668 = vmatprep.subr.mxu0 0.0
        %1669 = vmatpush2.msra.mxu0 0.0
        %1670 = vmatprep.subr.mxu0 0.0
        %1671 = vmatpush2.msra.mxu0 0.0
        %1672 = vmatprep.subr.mxu0 0.0
        %1673 = vmatpush2.msra.mxu0 0.0
        %1674 = vmatprep.subr.mxu0 0.0
        %1675 = vmatpush2.msra.mxu0 0.0
        %1676 = vmatprep.subr.mxu0 0.0
        %1677 = vmatpush2.msra.mxu0 0.0
        %1678 = vmatprep.subr.mxu0 0.0
        %1679 = vmatpush2.msra.mxu0 0.0
        %1680 = vmatprep.subr.mxu0 0.0
        %1681 = vmatpush2.msra.mxu0 0.0
        %1682 = vmatprep.subr.mxu0 0.0
        %1683 = vmatpush2.msra.mxu0 0.0
        %1684 = vmatprep.subr.mxu0 0.0
        %1685 = vmatpush2.msra.mxu0 0.0
        %1686 = vmatprep.subr.mxu0 0.0
        %1687 = vmatpush2.msra.mxu0 0.0
        %1688 = vmatprep.subr.mxu0 0.0
        %1689 = vmatpush2.msra.mxu0 0.0
        %1690 = vmatprep.subr.mxu0 0.0
        %1691 = vmatpush2.msra.mxu0 0.0
        %1692 = vmatprep.subr.mxu0 0.0
        %1693 = vmatpush2.msra.mxu0 0.0
        %1694 = vmatprep.subr.mxu0 0.0
        %1695 = vmatpush2.msra.mxu0 0.0
        %1696 = vmatprep.subr.mxu0 0.0
        %1697 = vmatpush2.msra.mxu0 0.0
        %1698 = vmatprep.mubr.f32.mxu0 0.0
        %1699 = vmatmul.mubr.f32.gmra.mxu0 %v1552
        %v1700 = vpop.f32.mrf.mxu0
        %v1701 = vadd.f32 0.0, %v1700
        %v1702 = vpop.f32.mrf.mxu0
        %v1703 = vadd.f32 0.0, %v1702
        %1704 = vdwg.mxu0
        %v1705 = vadd.f32 %v1559, %v1630
        %v1706 = vadd.f32 %v1560, %v1632
        %v1707 = vadd.f32 %v1561, %v1701
        %v1708 = vadd.f32 %v1562, %v1703
        %v1709 = vxor.u32 %v1705, 2147483648
        %v1710 = vmul.f32 %v1709, 1.442695
        %v1711 = vpow.pop %v1710
        %v1712 = vadd.f32 %v1711, 1.0
        %v1713 = vrcp.pop %v1712
        %v1714 = vmul.f32 1.0, %v1713
        %v1715 = vxor.u32 %v1706, 2147483648
        %v1716 = vmul.f32 %v1715, 1.442695
        %v1717 = vpow.pop %v1716
        %v1718 = vadd.f32 %v1717, 1.0
        %v1719 = vrcp.pop %v1718
        %v1720 = vmul.f32 1.0, %v1719
        %v1721 = vtanh.pop %v1707
        %v1722 = vxor.u32 %v1708, 2147483648
        %v1723 = vmul.f32 %v1722, 1.442695
        %v1724 = vpow.pop %v1723
        %v1725 = vadd.f32 %v1724, 1.0
        %v1726 = vrcp.pop %v1725
        %v1727 = vmul.f32 1.0, %v1726
        %v1728 = vmul.f32 %v1720, %v1549
        %v1729 = vmul.f32 %v1714, %v1721
        %v1730 = vadd.f32 %v1728, %v1729
        %v1731 = vtanh.pop %v1730
        %v1732 = vmul.f32 %v1727, %v1731
        %v1733 = vsub.f32 %v1730, %v1549
        %v1734 = vstv %s1558
        %v1735 = vmul.f32 %v1734, %v1733
        %v1736 = vadd.f32 %v1549, %v1735
        %v1737 = vsub.f32 %v1732, %v1552
        %v1738 = vmul.f32 %v1734, %v1737
        %v1739 = vadd.f32 %v1552, %v1738
        %v1740 = vmul.f32 %v1734, %v1732
        %v1741 = vadd.f32 %v1554, %v1740
        %s1742 = sadd.s32 %s1117, 3
        %p1743 = scmp.lt.s32.totalorder %s1742, 8
        %s1744 = scalar_select %p1743, 1, 0
        %s1745 = scvt.s32.f32 %s1744
        %v1746 = vld [vmem:[#allocation2 + $0x60] sm:$0xff]
        %v1747 = vld [vmem:[#allocation2 + $0x68] sm:$0xff]
        %v1748 = vld [vmem:[#allocation2 + $0x70] sm:$0xff]
        %v1749 = vld [vmem:[#allocation2 + $0x78] sm:$0xff]
        %1750 = vmatprep.subr.mxu0 %v1186
        %1751 = vmatpush1.msra.mxu0 %v1185
        %1752 = vmatprep.subr.mxu0 %v1182
        %1753 = vmatpush1.msra.mxu0 %v1181
        %1754 = vmatprep.subr.mxu0 %v1178
        %1755 = vmatpush1.msra.mxu0 %v1177
        %1756 = vmatprep.subr.mxu0 %v1174
        %1757 = vmatpush1.msra.mxu0 %v1173
        %1758 = vmatprep.subr.mxu0 %v1170
        %1759 = vmatpush1.msra.mxu0 %v1169
        %1760 = vmatprep.subr.mxu0 %v1166
        %1761 = vmatpush1.msra.mxu0 %v1165
        %1762 = vmatprep.subr.mxu0 %v1162
        %1763 = vmatpush1.msra.mxu0 %v1161
        %1764 = vmatprep.subr.mxu0 %v1158
        %1765 = vmatpush1.msra.mxu0 %v1157
        %1766 = vmatprep.subr.mxu0 %v1154
        %1767 = vmatpush1.msra.mxu0 %v1153
        %1768 = vmatprep.subr.mxu0 %v1150
        %1769 = vmatpush1.msra.mxu0 %v1149
        %1770 = vmatprep.subr.mxu0 %v1146
        %1771 = vmatpush1.msra.mxu0 %v1145
        %1772 = vmatprep.subr.mxu0 %v1142
        %1773 = vmatpush1.msra.mxu0 %v1141
        %1774 = vmatprep.subr.mxu0 %v1138
        %1775 = vmatpush1.msra.mxu0 %v1137
        %1776 = vmatprep.subr.mxu0 %v1134
        %1777 = vmatpush1.msra.mxu0 %v1133
        %1778 = vmatprep.subr.mxu0 %v1130
        %1779 = vmatpush1.msra.mxu0 %v1129
        %1780 = vmatprep.subr.mxu0 %v1126
        %1781 = vmatpush1.msra.mxu0 %v1125
        %1782 = vmatprep.subr.mxu0 0.0
        %1783 = vmatpush2.msra.mxu0 0.0
        %1784 = vmatprep.subr.mxu0 0.0
        %1785 = vmatpush2.msra.mxu0 0.0
        %1786 = vmatprep.subr.mxu0 0.0
        %1787 = vmatpush2.msra.mxu0 0.0
        %1788 = vmatprep.subr.mxu0 0.0
        %1789 = vmatpush2.msra.mxu0 0.0
        %1790 = vmatprep.subr.mxu0 0.0
        %1791 = vmatpush2.msra.mxu0 0.0
        %1792 = vmatprep.subr.mxu0 0.0
        %1793 = vmatpush2.msra.mxu0 0.0
        %1794 = vmatprep.subr.mxu0 0.0
        %1795 = vmatpush2.msra.mxu0 0.0
        %1796 = vmatprep.subr.mxu0 0.0
        %1797 = vmatpush2.msra.mxu0 0.0
        %1798 = vmatprep.subr.mxu0 0.0
        %1799 = vmatpush2.msra.mxu0 0.0
        %1800 = vmatprep.subr.mxu0 0.0
        %1801 = vmatpush2.msra.mxu0 0.0
        %1802 = vmatprep.subr.mxu0 0.0
        %1803 = vmatpush2.msra.mxu0 0.0
        %1804 = vmatprep.subr.mxu0 0.0
        %1805 = vmatpush2.msra.mxu0 0.0
        %1806 = vmatprep.subr.mxu0 0.0
        %1807 = vmatpush2.msra.mxu0 0.0
        %1808 = vmatprep.subr.mxu0 0.0
        %1809 = vmatpush2.msra.mxu0 0.0
        %1810 = vmatprep.subr.mxu0 0.0
        %1811 = vmatpush2.msra.mxu0 0.0
        %1812 = vmatprep.subr.mxu0 0.0
        %1813 = vmatpush2.msra.mxu0 0.0
        %1814 = vmatprep.mubr.f32.mxu0 0.0
        %1815 = vmatmul.mubr.f32.gmra.mxu0 %v1739
        %v1816 = vpop.f32.mrf.mxu0
        %v1817 = vadd.f32 0.0, %v1816
        %v1818 = vpop.f32.mrf.mxu0
        %v1819 = vadd.f32 0.0, %v1818
        %1820 = vdwg.mxu0
        %1821 = vmatprep.subr.mxu0 %v1188
        %1822 = vmatpush1.msra.mxu0 %v1187
        %1823 = vmatprep.subr.mxu0 %v1184
        %1824 = vmatpush1.msra.mxu0 %v1183
        %1825 = vmatprep.subr.mxu0 %v1180
        %1826 = vmatpush1.msra.mxu0 %v1179
        %1827 = vmatprep.subr.mxu0 %v1176
        %1828 = vmatpush1.msra.mxu0 %v1175
        %1829 = vmatprep.subr.mxu0 %v1172
        %1830 = vmatpush1.msra.mxu0 %v1171
        %1831 = vmatprep.subr.mxu0 %v1168
        %1832 = vmatpush1.msra.mxu0 %v1167
        %1833 = vmatprep.subr.mxu0 %v1164
        %1834 = vmatpush1.msra.mxu0 %v1163
        %1835 = vmatprep.subr.mxu0 %v1160
        %1836 = vmatpush1.msra.mxu0 %v1159
        %1837 = vmatprep.subr.mxu0 %v1156
        %1838 = vmatpush1.msra.mxu0 %v1155
        %1839 = vmatprep.subr.mxu0 %v1152
        %1840 = vmatpush1.msra.mxu0 %v1151
        %1841 = vmatprep.subr.mxu0 %v1148
        %1842 = vmatpush1.msra.mxu0 %v1147
        %1843 = vmatprep.subr.mxu0 %v1144
        %1844 = vmatpush1.msra.mxu0 %v1143
        %1845 = vmatprep.subr.mxu0 %v1140
        %1846 = vmatpush1.msra.mxu0 %v1139
        %1847 = vmatprep.subr.mxu0 %v1136
        %1848 = vmatpush1.msra.mxu0 %v1135
        %1849 = vmatprep.subr.mxu0 %v1132
        %1850 = vmatpush1.msra.mxu0 %v1131
        %1851 = vmatprep.subr.mxu0 %v1128
        %1852 = vmatpush1.msra.mxu0 %v1127
        %1853 = vmatprep.subr.mxu0 0.0
        %1854 = vmatpush2.msra.mxu0 0.0
        %1855 = vmatprep.subr.mxu0 0.0
        %1856 = vmatpush2.msra.mxu0 0.0
        %1857 = vmatprep.subr.mxu0 0.0
        %1858 = vmatpush2.msra.mxu0 0.0
        %1859 = vmatprep.subr.mxu0 0.0
        %1860 = vmatpush2.msra.mxu0 0.0
        %1861 = vmatprep.subr.mxu0 0.0
        %1862 = vmatpush2.msra.mxu0 0.0
        %1863 = vmatprep.subr.mxu0 0.0
        %1864 = vmatpush2.msra.mxu0 0.0
        %1865 = vmatprep.subr.mxu0 0.0
        %1866 = vmatpush2.msra.mxu0 0.0
        %1867 = vmatprep.subr.mxu0 0.0
        %1868 = vmatpush2.msra.mxu0 0.0
        %1869 = vmatprep.subr.mxu0 0.0
        %1870 = vmatpush2.msra.mxu0 0.0
        %1871 = vmatprep.subr.mxu0 0.0
        %1872 = vmatpush2.msra.mxu0 0.0
        %1873 = vmatprep.subr.mxu0 0.0
        %1874 = vmatpush2.msra.mxu0 0.0
        %1875 = vmatprep.subr.mxu0 0.0
        %1876 = vmatpush2.msra.mxu0 0.0
        %1877 = vmatprep.subr.mxu0 0.0
        %1878 = vmatpush2.msra.mxu0 0.0
        %1879 = vmatprep.subr.mxu0 0.0
        %1880 = vmatpush2.msra.mxu0 0.0
        %1881 = vmatprep.subr.mxu0 0.0
        %1882 = vmatpush2.msra.mxu0 0.0
        %1883 = vmatprep.subr.mxu0 0.0
        %1884 = vmatpush2.msra.mxu0 0.0
        %1885 = vmatprep.mubr.f32.mxu0 0.0
        %1886 = vmatmul.mubr.f32.gmra.mxu0 %v1739
        %v1887 = vpop.f32.mrf.mxu0
        %v1888 = vadd.f32 0.0, %v1887
        %v1889 = vpop.f32.mrf.mxu0
        %v1890 = vadd.f32 0.0, %v1889
        %1891 = vdwg.mxu0
        %v1892 = vadd.f32 %v1746, %v1817
        %v1893 = vadd.f32 %v1747, %v1819
        %v1894 = vadd.f32 %v1748, %v1888
        %v1895 = vadd.f32 %v1749, %v1890
        %v1896 = vxor.u32 %v1892, 2147483648
        %v1897 = vmul.f32 %v1896, 1.442695
        %v1898 = vpow.pop %v1897
        %v1899 = vadd.f32 %v1898, 1.0
        %v1900 = vrcp.pop %v1899
        %v1901 = vmul.f32 1.0, %v1900
        %v1902 = vxor.u32 %v1893, 2147483648
        %v1903 = vmul.f32 %v1902, 1.442695
        %v1904 = vpow.pop %v1903
        %v1905 = vadd.f32 %v1904, 1.0
        %v1906 = vrcp.pop %v1905
        %v1907 = vmul.f32 1.0, %v1906
        %v1908 = vtanh.pop %v1894
        %v1909 = vxor.u32 %v1895, 2147483648
        %v1910 = vmul.f32 %v1909, 1.442695
        %v1911 = vpow.pop %v1910
        %v1912 = vadd.f32 %v1911, 1.0
        %v1913 = vrcp.pop %v1912
        %v1914 = vmul.f32 1.0, %v1913
        %v1915 = vmul.f32 %v1907, %v1736
        %v1916 = vmul.f32 %v1901, %v1908
        %v1917 = vadd.f32 %v1915, %v1916
        %v1918 = vtanh.pop %v1917
        %v1919 = vmul.f32 %v1914, %v1918
        %v1920 = vsub.f32 %v1917, %v1736
        %v1921 = vstv %s1745
        %v1922 = vmul.f32 %v1921, %v1920
        %v1923 = vadd.f32 %v1736, %v1922
        %v1924 = vsub.f32 %v1919, %v1739
        %v1925 = vmul.f32 %v1921, %v1924
        %v1926 = vadd.f32 %v1739, %v1925
        %v1927 = vmul.f32 %v1921, %v1919
        %v1928 = vadd.f32 %v1741, %v1927
        %1929 = vst [vmem:[#allocation3] sm:$0xff] %v1926
        %1930 = vst [vmem:[#allocation4] sm:$0xff] %v1923
        %1931 = vst [vmem:[#allocation5] sm:$0xff] %v1928
        %p1932 = scmp.eq.s32.totalorder %s31, 1
        // Predicated region
        $region65: #{tpu_custom_call.1} parent=43 // pred_check
          %p1933 = pneg %p1932
        $region66: #{tpu_custom_call.1} parent=43 // pred_check_branch
          %1935 = sbr.rel (%p1933) target = $region68
        $region67: #{tpu_custom_call.1} parent=43 // pred_region
          %v1936 = vmul.f32 %v1928, 0.125
          %1937 = vst [vmem:[#allocation15] sm:$0xff] %v1936
          %v1938 = vld [vmem:[#allocation12] sm:$0xff]
          %v1939 = vld [vmem:[#allocation12 + $0x8] sm:$0xff]
          %v1940 = vld [vmem:[#allocation12 + $0x10] sm:$0xff]
          %v1941 = vld [vmem:[#allocation12 + $0x18] sm:$0xff]
          %v1942 = vld [vmem:[#allocation12 + $0x20] sm:$0xff]
          %v1943 = vld [vmem:[#allocation12 + $0x28] sm:$0xff]
          %v1944 = vld [vmem:[#allocation12 + $0x30] sm:$0xff]
          %v1945 = vld [vmem:[#allocation12 + $0x38] sm:$0xff]
          %v1946 = vld [vmem:[#allocation12 + $0x40] sm:$0xff]
          %v1947 = vld [vmem:[#allocation12 + $0x48] sm:$0xff]
          %v1948 = vld [vmem:[#allocation12 + $0x50] sm:$0xff]
          %v1949 = vld [vmem:[#allocation12 + $0x58] sm:$0xff]
          %v1950 = vld [vmem:[#allocation12 + $0x60] sm:$0xff]
          %v1951 = vld [vmem:[#allocation12 + $0x68] sm:$0xff]
          %v1952 = vld [vmem:[#allocation12 + $0x70] sm:$0xff]
          %v1953 = vld [vmem:[#allocation12 + $0x78] sm:$0xff]
          %v1954 = vld [vmem:[%s5] sm:$0x1]
          %v1956 = vlaneseq
          %v1957 = vshrl.u32 %v1956, 7
          %v1958 = vsub.s32 0, %v1957
          %v1959 = vrot.slane %v1954, %v1958
          %1961 = vmatprep.subr.mxu0 0.0
          %1962 = vmatpush1.msra.mxu0 %v1953
          %1963 = vmatprep.subr.mxu0 0.0
          %1964 = vmatpush1.msra.mxu0 %v1952
          %1965 = vmatprep.subr.mxu0 0.0
          %1966 = vmatpush1.msra.mxu0 %v1951
          %1967 = vmatprep.subr.mxu0 0.0
          %1968 = vmatpush1.msra.mxu0 %v1950
          %1969 = vmatprep.subr.mxu0 0.0
          %1970 = vmatpush1.msra.mxu0 %v1949
          %1971 = vmatprep.subr.mxu0 0.0
          %1972 = vmatpush1.msra.mxu0 %v1948
          %1973 = vmatprep.subr.mxu0 0.0
          %1974 = vmatpush1.msra.mxu0 %v1947
          %1975 = vmatprep.subr.mxu0 0.0
          %1976 = vmatpush1.msra.mxu0 %v1946
          %1977 = vmatprep.subr.mxu0 0.0
          %1978 = vmatpush1.msra.mxu0 %v1945
          %1979 = vmatprep.subr.mxu0 0.0
          %1980 = vmatpush1.msra.mxu0 %v1944
          %1981 = vmatprep.subr.mxu0 0.0
          %1982 = vmatpush1.msra.mxu0 %v1943
          %1983 = vmatprep.subr.mxu0 0.0
          %1984 = vmatpush1.msra.mxu0 %v1942
          %1985 = vmatprep.subr.mxu0 0.0
          %1986 = vmatpush1.msra.mxu0 %v1941
          %1987 = vmatprep.subr.mxu0 0.0
          %1988 = vmatpush1.msra.mxu0 %v1940
          %1989 = vmatprep.subr.mxu0 0.0
          %1990 = vmatpush1.msra.mxu0 %v1939
          %1991 = vmatprep.subr.mxu0 0.0
          %1992 = vmatpush1.msra.mxu0 %v1938
          %1993 = vmatprep.subr.mxu0 0.0
          %1994 = vmatpush2.msra.mxu0 0.0
          %1995 = vmatprep.subr.mxu0 0.0
          %1996 = vmatpush2.msra.mxu0 0.0
          %1997 = vmatprep.subr.mxu0 0.0
          %1998 = vmatpush2.msra.mxu0 0.0
          %1999 = vmatprep.subr.mxu0 0.0
          %2000 = vmatpush2.msra.mxu0 0.0
          %2001 = vmatprep.subr.mxu0 0.0
          %2002 = vmatpush2.msra.mxu0 0.0
          %2003 = vmatprep.subr.mxu0 0.0
          %2004 = vmatpush2.msra.mxu0 0.0
          %2005 = vmatprep.subr.mxu0 0.0
          %2006 = vmatpush2.msra.mxu0 0.0
          %2007 = vmatprep.subr.mxu0 0.0
          %2008 = vmatpush2.msra.mxu0 0.0
          %2009 = vmatprep.subr.mxu0 0.0
          %2010 = vmatpush2.msra.mxu0 0.0
          %2011 = vmatprep.subr.mxu0 0.0
          %2012 = vmatpush2.msra.mxu0 0.0
          %2013 = vmatprep.subr.mxu0 0.0
          %2014 = vmatpush2.msra.mxu0 0.0
          %2015 = vmatprep.subr.mxu0 0.0
          %2016 = vmatpush2.msra.mxu0 0.0
          %2017 = vmatprep.subr.mxu0 0.0
          %2018 = vmatpush2.msra.mxu0 0.0
          %2019 = vmatprep.subr.mxu0 0.0
          %2020 = vmatpush2.msra.mxu0 0.0
          %2021 = vmatprep.subr.mxu0 0.0
          %2022 = vmatpush2.msra.mxu0 0.0
          %2023 = vmatprep.subr.mxu0 0.0
          %2024 = vmatpush2.msra.mxu0 0.0
          %2025 = vmatprep.mubr.f32.mxu0 0.0
          %2026 = vmatmul.mubr.f32.gmra.mxu0 %v1936
          %v2027 = vpop.f32.mrf.mxu0
          %v2028 = vadd.f32 %v1959, %v2027
          %v2029 = vpop.f32.mrf.mxu0
          %2030 = vdwg.mxu0
          %2031 = vst [vmem:[#allocation14] sm:$0xff] %v2028
        $region68: #{tpu_custom_call.1} parent=43 // pred_fallthru
          _
        // Predicated region
        $region69: #{tpu_custom_call.1} parent=43 // pred_check
          %p2032 = pneg %p189
        $region70: #{tpu_custom_call.1} parent=43 // pred_check_branch
          %2034 = sbr.rel (%p2032) target = $region72
        $region71: #{tpu_custom_call.1} parent=43 // pred_region
          %s2036 = ssub.s32 128, 128
          %2037 = vsyncadd [#allocation8], %s2036
          %s2038 = smul.addr %s30, 128
          %s2039 = scalar_lea.hbm %s6, %s2038
          %s2041 = sshll.u32 [#allocation14], 4
          %s2042 = int_to_ptr.vmem [resolvable:$true] %s2041
          %2044 = dma.vmem_to_hbm [thread:$0]  %s2042, 128, %s2039, [#allocation8]
        $region72: #{tpu_custom_call.1} parent=43 // pred_fallthru
          _
        // Predicated region
        $region73: #{tpu_custom_call.1} parent=43 // pred_check
          %p2045 = pneg %p215
        $region74: #{tpu_custom_call.1} parent=43 // pred_check_branch
          %2047 = sbr.rel (%p2045) target = $region76
        $region75: #{tpu_custom_call.1} parent=43 // pred_region
          %s2049 = ssub.s32 128, 128
          %2050 = vsyncadd [#allocation16], %s2049
          %s2051 = smul.addr %s30, 128
          %s2052 = scalar_lea.hbm %s7, %s2051
          %s2054 = sshll.u32 [#allocation15], 4
          %s2055 = int_to_ptr.vmem [resolvable:$true] %s2054
          %2057 = dma.vmem_to_hbm [thread:$0]  %s2055, 128, %s2052, [#allocation16]
        $region76: #{tpu_custom_call.1} parent=43 // pred_fallthru
          _
        // Predicated region
        $region77: #{tpu_custom_call.1} parent=43 // pred_check
          %p2058 = pneg %p189
        $region78: #{tpu_custom_call.1} parent=43 // pred_check_branch
          %2060 = sbr.rel (%p2058) target = $region80
        $region79: #{tpu_custom_call.1} parent=43 // pred_region
          %2061 = dma.done [#allocation8], 128
        $region80: #{tpu_custom_call.1} parent=43 // pred_fallthru
          _
        // Predicated region
        $region81: #{tpu_custom_call.1} parent=43 // pred_check
          %p2062 = pneg %p215
        $region82: #{tpu_custom_call.1} parent=43 // pred_check_branch
          %2064 = sbr.rel (%p2062) target = $region84
        $region83: #{tpu_custom_call.1} parent=43 // pred_region
          %2065 = dma.done [#allocation16], 128
        $region84: #{tpu_custom_call.1} parent=43 // pred_fallthru
          _
      $region44: #{tpu_custom_call.1} parent=5 // pred_fallthru
        _
      %p2066 = scmp.le.s32.totalorder 2, %s21
      // Predicated region
      $region85: #{tpu_custom_call.1} parent=5 // pred_check
        %p2067 = pneg %p2066
      $region86: #{tpu_custom_call.1} parent=5 // pred_check_branch
        %2069 = sbr.rel (%p2067) target = $region88
      $region87: #{tpu_custom_call.1} parent=5 // pred_region
        %s2070 = ssub.s32 %s21, 2
      $region88: #{tpu_custom_call.1} parent=5 // pred_fallthru
        _
    $region6: #{tpu_custom_call.1} parent=1 // loop_footer
      %s25 = sadd.s32 1, %s21
    $region7: #{tpu_custom_call.1} parent=1 // loop_footer_branch
      %20 = sbr.rel target = $region3
    $region8: #{tpu_custom_call.1} parent=1 // loop_exit
      _
    %2071 = vsyncpa [#allocation7], 1
    %s2072 = scalar_lea.sflag [#allocation7], 1
    %2073 = vsyncpa %s2072, 1
    %2074 = vsyncpa [#allocation10], 1
    %2075 = vsyncpa [#allocation13], 1
    %2076 = vsyncpa [#allocation8], 1
    %s2077 = scalar_lea.sflag [#allocation8], 1
    %2078 = vsyncpa %s2077, 1
    %2079 = vsyncpa [#allocation16], 1

</llo_original>
